<compile_context>
chip_gen: v7x
topology: tpu7x:2x2x1
jax: 0.10.0
libtpu: 0.0.40
codegen_flags: <defaults>
</compile_context>

<pallas_src>
import jax
import jax.numpy as jnp
from jax.experimental import pallas as pl
from jax.experimental.pallas import tpu as pltpu


# ----------------------------------------------------------------------------
# Weight preprocessing: split the (6*Fin, Fout) GWT projection into the slabs the kernel
# consumes, folding the duplicated |x1-x2| block (feats blocks 1 and 3 are identical).
#   w_a: slab for |x1-x2|            (P, Fin,   Fout)   [= W1 + W3]
#   w_b: slab for |x3-x2|            (P, Fin,   Fout)   [= W4]
#   w_c: slab for [x4;|x2-x4|;|x4-x3|] (P, 3*Fin, Fout) [= concat(W0, W2, W5)]
# ----------------------------------------------------------------------------
def _split_fc_weights(fc_w):
    P, six_fin, Fout = fc_w.shape
    Fin = six_fin // 6
    w6 = fc_w.reshape(P, 6, Fin, Fout)
    w_a = w6[:, 1] + w6[:, 3]
    w_b = w6[:, 4]
    w_c = jnp.concatenate([w6[:, 0], w6[:, 2], w6[:, 5]], axis=1)
    return w_a, w_b, w_c


# ----------------------------------------------------------------------------
# Fused DVEncoder kernel (grid axis = metapath / processor p)
# ----------------------------------------------------------------------------
def dv_encoder_kernel(adjT_ref, x_ref, wa_ref, wb_ref, wc_ref, b_ref, alpha_ref,
                      wfc_ref, bfc_ref, att_ref,
                      out_ref, emb_sc, sp_sc):
    bf16 = jnp.bfloat16
    p = pl.program_id(0)

    AT = adjT_ref[0]          # (N, N) bf16, AT[dst, src] (pre-transposed in the wrapper)
    x = x_ref[...]            # (N, Fin) bf16

    def agg(v_bf):            # source->target aggregation, MXU-native layout, f32 accumulate
        return jnp.dot(AT, v_bf, preferred_element_type=jnp.float32)

    # Serial diffusion chain x1 -> x2 -> x3 -> x4, with the independent projection dots
    # interleaved so they fill the MXU bubbles of the chain's data dependency.
    x1 = agg(x)
    x2 = agg(x1.astype(bf16))
    acc = jnp.dot(jnp.abs(x1 - x2).astype(bf16), wa_ref[0],
                  preferred_element_type=jnp.float32)            # ready after x2
    x3 = agg(x2.astype(bf16))
    acc = acc + jnp.dot(jnp.abs(x3 - x2).astype(bf16), wb_ref[0],
                        preferred_element_type=jnp.float32)      # ready after x3
    x4 = agg(x3.astype(bf16))
    # Remaining x4-dependent blocks fused into one K = 3*Fin dot (better MXU fill on v6e/v7x).
    late = jnp.concatenate([x4.astype(bf16),
                            jnp.abs(x2 - x4).astype(bf16),
                            jnp.abs(x4 - x3).astype(bf16)], axis=1)   # (N, 3*Fin)
    acc = acc + jnp.dot(late, wc_ref[0], preferred_element_type=jnp.float32)
    acc = acc + b_ref[0]                                         # (N, Fout)

    alpha = alpha_ref[p]                                         # PReLU slope (SMEM scalar)
    emb = jnp.where(acc >= 0.0, acc, alpha * acc)                # f32

    # Stash this metapath's embedding (bf16 to halve resident VMEM) + attention summary.
    emb_sc[p] = emb.astype(bf16)
    proj = jnp.tanh(jnp.dot(emb, wfc_ref[...], preferred_element_type=jnp.float32)
                    + bfc_ref[...])
    sp_sc[p] = jnp.mean(proj, axis=0, keepdims=True)             # (1, Fout)

    # Fused semantic-attention epilogue on the last metapath.
    @pl.when(p == pl.num_programs(0) - 1)
    def _finalize():
        sp = sp_sc[...][:, 0, :]                                       # (P, Fout)
        scores = jnp.sum(sp * att_ref[...], axis=1, keepdims=True)     # (P, 1)
        beta = jax.nn.softmax(scores, axis=0)                          # (P, 1)
        mix = beta[0, 0] * emb_sc[0].astype(jnp.float32)
        for q in range(1, emb_sc.shape[0]):
            mix = mix + beta[q, 0] * emb_sc[q].astype(jnp.float32)
        out_ref[...] = mix


def dv_encoder(h, adjs, fc_w, fc_b, prelu_a, att_wfc, att_bfc, att_vec):
    """Fused DVEncoder forward.

    h: (N, Fin) | adjs: (P, N, N) with adjs[p, src, dst] = w | fc_w: (P, 6*Fin, Fout)
    fc_b: (P, 1, Fout) | prelu_a: (P,) | att_wfc: (Fout, Fout) | att_bfc, att_vec: (1, Fout)
    """
    P, N, _ = adjs.shape
    Fin = h.shape[1]
    Fout = fc_w.shape[-1]
    if P == 0:
        return h

    bf16 = jnp.bfloat16
    # Pre-transpose A (fused by XLA into the bf16 cast) so the kernel contraction is MXU-native.
    adjT_bf = jnp.swapaxes(adjs, 1, 2).astype(bf16)              # (P, N, N), AT[dst, src]
    x_bf = h.astype(bf16)
    w_a, w_b, w_c = _split_fc_weights(fc_w)
    w_a, w_b, w_c = w_a.astype(bf16), w_b.astype(bf16), w_c.astype(bf16)

    # VMEM budget: double-buffered inputs + resident output + live diffusion temporaries
    # + persistent scratch, with 2x slack; capped at 3/4 of physical VMEM (v7x headroom).
    vmem_need = (2 * N * N * 2 + 2 * N * Fin * 2 + 2 * 5 * Fin * Fout * 2
                 + 2 * Fout * 4 + 2 * (Fout * Fout + 2 * Fout) * 4
                 + 2 * N * Fout * 4 + 6 * N * Fin * 4
                 + P * N * Fout * 2 + P * Fout * 4)
    vmem_cap = 128 << 20
    try:
        vmem_cap = int(getattr(pltpu.get_tpu_info(), "vmem_capacity_bytes", vmem_cap))
    except Exception:
        pass
    vmem_limit = int(min(max(2 * vmem_need, 4 << 20), (vmem_cap * 3) // 4))

    cost = pl.CostEstimate(
        flops=int(P * (8 * N * N * Fin + 10 * N * Fin * Fout + 2 * N * Fout * Fout)
                  + 2 * P * N * Fout),
        transcendentals=int(P * N * Fout + 2 * P),
        bytes_accessed=int(P * N * N * 2 + N * Fin * 2 + P * 5 * Fin * Fout * 2
                           + P * Fout * 4 + (Fout * Fout + 2 * Fout) * 4 + P * 4
                           + N * Fout * 4))

    return pl.pallas_call(
        dv_encoder_kernel,
        out_shape=jax.ShapeDtypeStruct((N, Fout), jnp.float32),
        grid=(P,),
        in_specs=[
            pl.BlockSpec((1, N, N), lambda p: (p, 0, 0)),            # A^T (per p)
            pl.BlockSpec((N, Fin), lambda p: (0, 0)),                # node features (shared)
            pl.BlockSpec((1, Fin, Fout), lambda p: (p, 0, 0)),       # w_a : |x1-x2| (folded)
            pl.BlockSpec((1, Fin, Fout), lambda p: (p, 0, 0)),       # w_b : |x3-x2|
            pl.BlockSpec((1, 3 * Fin, Fout), lambda p: (p, 0, 0)),   # w_c : fused late blocks
            pl.BlockSpec((1, 1, Fout), lambda p: (p, 0, 0)),         # fc bias
            pl.BlockSpec(memory_space=pltpu.MemorySpace.SMEM),       # prelu slopes (P,)
            pl.BlockSpec((Fout, Fout), lambda p: (0, 0)),            # attention W
            pl.BlockSpec((1, Fout), lambda p: (0, 0)),               # attention b
            pl.BlockSpec((1, Fout), lambda p: (0, 0)),               # attention vector
        ],
        out_specs=pl.BlockSpec((N, Fout), lambda p: (0, 0)),
        scratch_shapes=[
            pltpu.VMEM((P, N, Fout), jnp.bfloat16),   # per-metapath embeddings (bf16 resident)
            pltpu.VMEM((P, 1, Fout), jnp.float32),    # per-metapath attention summaries
        ],
        # P axis carries fused-attention state => must be sequential ("arbitrary").
        compiler_params=pltpu.CompilerParams(
            dimension_semantics=("arbitrary",),
            vmem_limit_bytes=vmem_limit),
        cost_estimate=cost,
    )(adjT_bf, x_bf, w_a, w_b, w_c, fc_b, prelu_a, att_wfc, att_bfc, att_vec)


# ----------------------------------------------------------------------------
# Pure-JAX references
#   * _dv_ref_matched : same math / same bf16 casts & bf16 emb storage as the kernel (tight tol)
#   * _dv_ref_f32     : module-faithful f32, including the original redundant U0/U1/U2 path
# ----------------------------------------------------------------------------
def _gwt_ref_matched(adj, x, w_a, w_b, w_c, b, a):
    bf = jnp.bfloat16
    AT = adj.T.astype(bf)
    agg = lambda v: jnp.dot(AT, v.astype(bf), preferred_element_type=jnp.float32)
    x1 = agg(x); x2 = agg(x1); x3 = agg(x2); x4 = agg(x3)
    acc = jnp.dot(jnp.abs(x1 - x2).astype(bf), w_a.astype(bf),
                  preferred_element_type=jnp.float32)
    acc = acc + jnp.dot(jnp.abs(x3 - x2).astype(bf), w_b.astype(bf),
                        preferred_element_type=jnp.float32)
    late = jnp.concatenate([x4.astype(bf), jnp.abs(x2 - x4).astype(bf),
                            jnp.abs(x4 - x3).astype(bf)], axis=1)
    acc = acc + jnp.dot(late, w_c.astype(bf), preferred_element_type=jnp.float32)
    acc = acc + b
    return jnp.where(acc >= 0.0, acc, a * acc)


def _gwt_ref_f32(adj, x, w, b, a, J=3):
    AT = adj.T
    max_scale = 2 ** (J - 1)
    diff, x_curr = [], x
    for step in range(1, max_scale + 1):
        x_curr = AT @ x_curr
        if step & (step - 1) == 0:
            diff.append(x_curr)
    Fin = x.shape[1]
    F0 = diff[-1]
    F1 = [jnp.abs(diff[i - 1] - diff[i]) for i in range(1, len(diff))]
    U_diff = [jnp.concatenate(diff, axis=1)]
    for _ in range(1, max_scale):
        U_diff.append(AT @ U_diff[-1])
    F2 = []
    for j in range(J):
        for jp in range(j + 1, J):
            s, e = j * Fin, (j + 1) * Fin
            F2.append(jnp.abs(U_diff[jp][:, s:e] - U_diff[jp - 1][:, s:e]))
    feats = jnp.concatenate([F0] + F1 + F2, axis=1)
    out = feats @ w + b
    return jnp.where(out >= 0.0, out, a * out)


def _sem_attn_ref(embeds, wfc, bfc, att, bf16_mix=False):
    P = embeds.shape[0]
    sp = jnp.stack([jnp.mean(jnp.tanh(embeds[q] @ wfc + bfc), axis=0) for q in range(P)])
    beta = jax.nn.softmax(jnp.sum(sp * att, axis=1))
    emb_mix = embeds.astype(jnp.bfloat16).astype(jnp.float32) if bf16_mix else embeds
    return jnp.einsum('p,pnf->nf', beta, emb_mix)


def _dv_ref_matched(h, adjs, fc_w, fc_b, prelu_a, wfc, bfc, att):
    w_a, w_b, w_c = _split_fc_weights(fc_w)
    embeds = jnp.stack([_gwt_ref_matched(adjs[p], h, w_a[p], w_b[p], w_c[p],
                                         fc_b[p], prelu_a[p])
                        for p in range(adjs.shape[0])])
    return _sem_attn_ref(embeds, wfc, bfc, att, bf16_mix=True)


def _dv_ref_f32(h, adjs, fc_w, fc_b, prelu_a, wfc, bfc, att):
    embeds = jnp.stack([_gwt_ref_f32(adjs[p], h, fc_w[p], fc_b[p], prelu_a[p])
                        for p in range(adjs.shape[0])])
    return _sem_attn_ref(embeds, wfc, bfc, att, bf16_mix=False)


if __name__ == "__main__":
    # Small but lane-dense config: hidden_dim = 128 so feature blocks / output use full lanes.
    P, N, F = 3, 16, 128
    key = jax.random.PRNGKey(0)
    ks = jax.random.split(key, 8)

    h = jax.random.normal(ks[0], (N, F), jnp.float32)
    # Asymmetric adjacency (exercises the A vs A^T source->target handling), bounded weights.
    adjs = jax.random.uniform(ks[1], (P, N, N), jnp.float32) / N

    # GraphWaveletTransform params (per processor), deterministic synthetic init.
    total_dim = 6 * F                                   # in_ft * (1 + (J-1) + J*(J-1)//2), J = 3
    fc_std = 1.414 * (2.0 / (total_dim + F)) ** 0.5     # xavier_normal, gain = 1.414
    fc_w = fc_std * jax.random.normal(ks[2], (P, total_dim, F), jnp.float32)
    fc_b = jnp.zeros((P, 1, F), jnp.float32)
    prelu_a = jnp.full((P,), 0.25, jnp.float32)         # PReLU default slope

    # SemanticsAttention params.
    att_wfc = ((1.0 / F) ** 0.5) * jax.random.normal(ks[3], (F, F), jnp.float32)
    att_bfc = jnp.zeros((1, F), jnp.float32)
    att_vec = (1.414 * (2.0 / (1 + F)) ** 0.5) * jax.random.normal(ks[4], (1, F), jnp.float32)

    out = dv_encoder(h, adjs, fc_w, fc_b, prelu_a, att_wfc, att_bfc, att_vec)
    out = jax.block_until_ready(out)

    assert out.shape == (N, F)
    assert bool(jnp.all(jnp.isfinite(out)))

    ref_bf = _dv_ref_matched(h, adjs, fc_w, fc_b, prelu_a, att_wfc, att_bfc, att_vec)
    ref_32 = _dv_ref_f32(h, adjs, fc_w, fc_b, prelu_a, att_wfc, att_bfc, att_vec)
    assert bool(jnp.allclose(out, ref_bf, atol=5e-3, rtol=5e-3)), "mismatch vs precision-matched ref"
    assert bool(jnp.allclose(out, ref_32, atol=2e-2, rtol=2e-2)), "mismatch vs f32 module reference"

    print("KERNEL_OK")
</pallas_src>

<mosaic_0001>
module attributes {stable_mosaic.version = 11 : i64} {
  func.func @dv_encoder_kernel(%arg0: i32, %arg1: memref<1x16x16xbf16, #tpu.memory_space<vmem>>, %arg2: memref<16x128xbf16, #tpu.memory_space<vmem>>, %arg3: memref<1x128x128xbf16, #tpu.memory_space<vmem>>, %arg4: memref<1x128x128xbf16, #tpu.memory_space<vmem>>, %arg5: memref<1x384x128xbf16, #tpu.memory_space<vmem>>, %arg6: memref<1x1x128xf32, #tpu.memory_space<vmem>>, %arg7: memref<3xf32, #tpu.memory_space<smem>>, %arg8: memref<128x128xf32, #tpu.memory_space<vmem>>, %arg9: memref<1x128xf32, #tpu.memory_space<vmem>>, %arg10: memref<1x128xf32, #tpu.memory_space<vmem>>, %arg11: memref<16x128xf32, #tpu.memory_space<vmem>>, %arg12: memref<3x16x128xbf16, #tpu.memory_space<vmem>>, %arg13: memref<3x1x128xf32, #tpu.memory_space<vmem>>) attributes {dimension_semantics = [#tpu.dimension_semantics<arbitrary>], iteration_bounds = array<i64: 3>, scalar_prefetch = 0 : i64, scratch_operands = 2 : i64, tpu.core_type = #tpu.core_type<tc>, window_params = [{transform_indices = @transform_0, window_bounds = array<i64: 1, 16, 16>}, {pipeline_mode = #tpu.pipeline_mode<synchronous>, transform_indices = @transform_1, window_bounds = array<i64: 16, 128>}, {transform_indices = @transform_2, window_bounds = array<i64: 1, 128, 128>}, {transform_indices = @transform_3, window_bounds = array<i64: 1, 128, 128>}, {transform_indices = @transform_4, window_bounds = array<i64: 1, 384, 128>}, {transform_indices = @transform_5, window_bounds = array<i64: 1, 1, 128>}, {transform_indices = @transform_6, window_bounds = array<i64: 3>}, {pipeline_mode = #tpu.pipeline_mode<synchronous>, transform_indices = @transform_7, window_bounds = array<i64: 128, 128>}, {pipeline_mode = #tpu.pipeline_mode<synchronous>, transform_indices = @transform_8, window_bounds = array<i64: 1, 128>}, {pipeline_mode = #tpu.pipeline_mode<synchronous>, transform_indices = @transform_9, window_bounds = array<i64: 1, 128>}, {pipeline_mode = #tpu.pipeline_mode<synchronous>, transform_indices = @transform_10, window_bounds = array<i64: 16, 128>}]} {
    %c0 = arith.constant 0 : index
    %c0_0 = arith.constant 0 : index
    %c0_1 = arith.constant 0 : index
    %0 = vector.load %arg1[%c0, %c0_0, %c0_1] : memref<1x16x16xbf16, #tpu.memory_space<vmem>>, vector<1x16x16xbf16>
    %1 = vector.shape_cast %0 : vector<1x16x16xbf16> to vector<16x16xbf16>
    %c0_2 = arith.constant 0 : index
    %c0_3 = arith.constant 0 : index
    %2 = vector.load %arg2[%c0_2, %c0_3] : memref<16x128xbf16, #tpu.memory_space<vmem>>, vector<16x128xbf16>
    %cst = arith.constant dense<0.000000e+00> : vector<16x128xf32>
    %3 = tpu.matmul %1, %2, %cst {dimension_numbers = #tpu.dot_dimension_numbers<[1], [0], [0], [1], [0, 0, 1, 1], [], []>} : vector<16x16xbf16>, vector<16x128xbf16>, vector<16x128xf32> -> vector<16x128xf32>
    %4 = arith.truncf %3 : vector<16x128xf32> to vector<16x128xbf16>
    %cst_4 = arith.constant dense<0.000000e+00> : vector<16x128xf32>
    %5 = tpu.matmul %1, %4, %cst_4 {dimension_numbers = #tpu.dot_dimension_numbers<[1], [0], [0], [1], [0, 0, 1, 1], [], []>} : vector<16x16xbf16>, vector<16x128xbf16>, vector<16x128xf32> -> vector<16x128xf32>
    %6 = arith.subf %3, %5 : vector<16x128xf32>
    %7 = math.absf %6 : vector<16x128xf32>
    %8 = arith.truncf %7 : vector<16x128xf32> to vector<16x128xbf16>
    %c0_5 = arith.constant 0 : index
    %c0_6 = arith.constant 0 : index
    %c0_7 = arith.constant 0 : index
    %9 = vector.load %arg3[%c0_5, %c0_6, %c0_7] : memref<1x128x128xbf16, #tpu.memory_space<vmem>>, vector<1x128x128xbf16>
    %10 = vector.shape_cast %9 : vector<1x128x128xbf16> to vector<128x128xbf16>
    %cst_8 = arith.constant dense<0.000000e+00> : vector<16x128xf32>
    %11 = tpu.matmul %8, %10, %cst_8 {dimension_numbers = #tpu.dot_dimension_numbers<[1], [0], [0], [1], [0, 0, 1, 1], [], []>} : vector<16x128xbf16>, vector<128x128xbf16>, vector<16x128xf32> -> vector<16x128xf32>
    %12 = arith.truncf %5 : vector<16x128xf32> to vector<16x128xbf16>
    %cst_9 = arith.constant dense<0.000000e+00> : vector<16x128xf32>
    %13 = tpu.matmul %1, %12, %cst_9 {dimension_numbers = #tpu.dot_dimension_numbers<[1], [0], [0], [1], [0, 0, 1, 1], [], []>} : vector<16x16xbf16>, vector<16x128xbf16>, vector<16x128xf32> -> vector<16x128xf32>
    %14 = arith.subf %13, %5 : vector<16x128xf32>
    %15 = math.absf %14 : vector<16x128xf32>
    %16 = arith.truncf %15 : vector<16x128xf32> to vector<16x128xbf16>
    %c0_10 = arith.constant 0 : index
    %c0_11 = arith.constant 0 : index
    %c0_12 = arith.constant 0 : index
    %17 = vector.load %arg4[%c0_10, %c0_11, %c0_12] : memref<1x128x128xbf16, #tpu.memory_space<vmem>>, vector<1x128x128xbf16>
    %18 = vector.shape_cast %17 : vector<1x128x128xbf16> to vector<128x128xbf16>
    %cst_13 = arith.constant dense<0.000000e+00> : vector<16x128xf32>
    %19 = tpu.matmul %16, %18, %cst_13 {dimension_numbers = #tpu.dot_dimension_numbers<[1], [0], [0], [1], [0, 0, 1, 1], [], []>} : vector<16x128xbf16>, vector<128x128xbf16>, vector<16x128xf32> -> vector<16x128xf32>
    %20 = arith.addf %11, %19 : vector<16x128xf32>
    %21 = arith.truncf %13 : vector<16x128xf32> to vector<16x128xbf16>
    %cst_14 = arith.constant dense<0.000000e+00> : vector<16x128xf32>
    %22 = tpu.matmul %1, %21, %cst_14 {dimension_numbers = #tpu.dot_dimension_numbers<[1], [0], [0], [1], [0, 0, 1, 1], [], []>} : vector<16x16xbf16>, vector<16x128xbf16>, vector<16x128xf32> -> vector<16x128xf32>
    %23 = arith.truncf %22 : vector<16x128xf32> to vector<16x128xbf16>
    %24 = arith.subf %5, %22 : vector<16x128xf32>
    %25 = math.absf %24 : vector<16x128xf32>
    %26 = arith.truncf %25 : vector<16x128xf32> to vector<16x128xbf16>
    %27 = arith.subf %22, %13 : vector<16x128xf32>
    %28 = math.absf %27 : vector<16x128xf32>
    %29 = arith.truncf %28 : vector<16x128xf32> to vector<16x128xbf16>
    %30 = tpu.concatenate %23, %26, %29 in 1 : vector<16x128xbf16>, vector<16x128xbf16>, vector<16x128xbf16> -> vector<16x384xbf16>
    %c0_15 = arith.constant 0 : index
    %c0_16 = arith.constant 0 : index
    %c0_17 = arith.constant 0 : index
    %31 = vector.load %arg5[%c0_15, %c0_16, %c0_17] : memref<1x384x128xbf16, #tpu.memory_space<vmem>>, vector<1x384x128xbf16>
    %32 = vector.shape_cast %31 : vector<1x384x128xbf16> to vector<384x128xbf16>
    %cst_18 = arith.constant dense<0.000000e+00> : vector<16x128xf32>
    %33 = tpu.matmul %30, %32, %cst_18 {dimension_numbers = #tpu.dot_dimension_numbers<[1], [0], [0], [1], [0, 0, 1, 1], [], []>} : vector<16x384xbf16>, vector<384x128xbf16>, vector<16x128xf32> -> vector<16x128xf32>
    %34 = arith.addf %20, %33 : vector<16x128xf32>
    %c0_19 = arith.constant 0 : index
    %c0_20 = arith.constant 0 : index
    %c0_21 = arith.constant 0 : index
    %35 = vector.load %arg6[%c0_19, %c0_20, %c0_21] : memref<1x1x128xf32, #tpu.memory_space<vmem>>, vector<1x1x128xf32>
    %36 = vector.shape_cast %35 : vector<1x1x128xf32> to vector<1x128xf32>
    %37 = vector.broadcast %36 : vector<1x128xf32> to vector<16x128xf32>
    %38 = arith.addf %34, %37 : vector<16x128xf32>
    %39 = arith.index_cast %arg0 : i32 to index
    %40 = memref.load %arg7[%39] : memref<3xf32, #tpu.memory_space<smem>>
    %cst_22 = arith.constant 0.000000e+00 : f32
    %41 = vector.broadcast %cst_22 : f32 to vector<16x128xf32>
    %42 = arith.cmpf oge, %38, %41 : vector<16x128xf32>
    %43 = vector.broadcast %40 : f32 to vector<16x128xf32>
    %44 = arith.mulf %43, %38 : vector<16x128xf32>
    %45 = arith.select %42, %38, %44 : vector<16x128xi1>, vector<16x128xf32>
    %46 = arith.truncf %45 : vector<16x128xf32> to vector<16x128xbf16>
    %47 = arith.index_cast %arg0 : i32 to index
    %c0_23 = arith.constant 0 : index
    %c0_24 = arith.constant 0 : index
    %48 = vector.load %arg12[%47, %c0_23, %c0_24] : memref<3x16x128xbf16, #tpu.memory_space<vmem>>, vector<1x16x128xbf16>
    %49 = vector.shape_cast %48 : vector<1x16x128xbf16> to vector<16x128xbf16>
    %50 = vector.shape_cast %46 : vector<16x128xbf16> to vector<1x16x128xbf16>
    tpu.vector_store %arg12[%47, %c0_23, %c0_24], %50 {strides = array<i32>} : memref<3x16x128xbf16, #tpu.memory_space<vmem>>, vector<1x16x128xbf16>,
    %c0_25 = arith.constant 0 : index
    %c0_26 = arith.constant 0 : index
    %51 = vector.load %arg8[%c0_25, %c0_26] : memref<128x128xf32, #tpu.memory_space<vmem>>, vector<128x128xf32>
    %cst_27 = arith.constant dense<0.000000e+00> : vector<16x128xf32>
    %52 = tpu.matmul %45, %51, %cst_27 {dimension_numbers = #tpu.dot_dimension_numbers<[1], [0], [0], [1], [0, 0, 1, 1], [], []>} : vector<16x128xf32>, vector<128x128xf32>, vector<16x128xf32> -> vector<16x128xf32>
    %c0_28 = arith.constant 0 : index
    %c0_29 = arith.constant 0 : index
    %53 = vector.load %arg9[%c0_28, %c0_29] : memref<1x128xf32, #tpu.memory_space<vmem>>, vector<1x128xf32>
    %54 = vector.broadcast %53 : vector<1x128xf32> to vector<16x128xf32>
    %55 = arith.addf %52, %54 : vector<16x128xf32>
    %56 = math.tanh %55 : vector<16x128xf32>
    %cst_30 = arith.constant dense<0.000000e+00> : vector<128xf32>
    %57 = vector.multi_reduction <add>, %56, %cst_30 [0] : vector<16x128xf32> to vector<128xf32>
    %58 = vector.shape_cast %57 : vector<128xf32> to vector<1x128xf32>
    %cst_31 = arith.constant 1.600000e+01 : f32
    %59 = vector.broadcast %cst_31 : f32 to vector<1x128xf32>
    %60 = arith.divf %58, %59 : vector<1x128xf32>
    %61 = arith.index_cast %arg0 : i32 to index
    %c0_32 = arith.constant 0 : index
    %c0_33 = arith.constant 0 : index
    %62 = vector.load %arg13[%61, %c0_32, %c0_33] : memref<3x1x128xf32, #tpu.memory_space<vmem>>, vector<1x1x128xf32>
    %63 = vector.shape_cast %62 : vector<1x1x128xf32> to vector<1x128xf32>
    %64 = vector.shape_cast %60 : vector<1x128xf32> to vector<1x1x128xf32>
    tpu.vector_store %arg13[%61, %c0_32, %c0_33], %64 {strides = array<i32>} : memref<3x1x128xf32, #tpu.memory_space<vmem>>, vector<1x1x128xf32>,
    %c2_i32 = arith.constant 2 : i32
    %65 = arith.cmpi eq, %arg0, %c2_i32 : i32
    %66 = arith.extui %65 : i1 to i32
    %c0_i32 = arith.constant 0 : i32
    %67 = arith.cmpi ne, %66, %c0_i32 : i32
    scf.if %67 {
      %c0_34 = arith.constant 0 : index
      %c0_35 = arith.constant 0 : index
      %c0_36 = arith.constant 0 : index
      %68 = vector.load %arg13[%c0_34, %c0_35, %c0_36] : memref<3x1x128xf32, #tpu.memory_space<vmem>>, vector<3x1x128xf32>
      %69 = vector.shape_cast %68 : vector<3x1x128xf32> to vector<3x128xf32>
      %c0_37 = arith.constant 0 : index
      %c0_38 = arith.constant 0 : index
      %70 = vector.load %arg10[%c0_37, %c0_38] : memref<1x128xf32, #tpu.memory_space<vmem>>, vector<1x128xf32>
      %71 = vector.broadcast %70 : vector<1x128xf32> to vector<3x128xf32>
      %72 = arith.mulf %69, %71 : vector<3x128xf32>
      %cst_39 = arith.constant dense<0.000000e+00> : vector<3xf32>
      %73 = vector.multi_reduction <add>, %72, %cst_39 [1] : vector<3x128xf32> to vector<3xf32>
      %74 = vector.shape_cast %73 : vector<3xf32> to vector<3x1xf32>
      %cst_40 = arith.constant dense<0xFF800000> : vector<1xf32>
      %75 = vector.multi_reduction <maximumf>, %74, %cst_40 [0] : vector<3x1xf32> to vector<1xf32>
      %cst_41 = arith.constant 0xFF800000 : f32
      %76 = vector.broadcast %cst_41 : f32 to vector<1xf32>
      %77 = arith.maximumf %76, %75 : vector<1xf32>
      %78 = vector.shape_cast %77 : vector<1xf32> to vector<1x1xf32>
      %79 = vector.broadcast %78 : vector<1x1xf32> to vector<3x1xf32>
      %80 = arith.subf %74, %79 : vector<3x1xf32>
      %81 = math.exp %80 : vector<3x1xf32>
      %cst_42 = arith.constant dense<0.000000e+00> : vector<1xf32>
      %82 = vector.multi_reduction <add>, %81, %cst_42 [0] : vector<3x1xf32> to vector<1xf32>
      %83 = vector.shape_cast %82 : vector<1xf32> to vector<1x1xf32>
      %84 = vector.broadcast %83 : vector<1x1xf32> to vector<3x1xf32>
      %85 = arith.divf %81, %84 : vector<3x1xf32>
      %86 = vector.extract_strided_slice %85 {offsets = [0, 0], sizes = [1, 1], strides = [1, 1]} : vector<3x1xf32> to vector<1x1xf32>
      %87 = vector.extract %86[0, 0] : f32 from vector<1x1xf32>
      %c0_43 = arith.constant 0 : index
      %c0_44 = arith.constant 0 : index
      %c0_45 = arith.constant 0 : index
      %88 = vector.load %arg12[%c0_43, %c0_44, %c0_45] : memref<3x16x128xbf16, #tpu.memory_space<vmem>>, vector<1x16x128xbf16>
      %89 = vector.shape_cast %88 : vector<1x16x128xbf16> to vector<16x128xbf16>
      %90 = arith.extf %89 : vector<16x128xbf16> to vector<16x128xf32>
      %91 = vector.broadcast %87 : f32 to vector<16x128xf32>
      %92 = arith.mulf %91, %90 : vector<16x128xf32>
      %93 = vector.extract_strided_slice %85 {offsets = [1, 0], sizes = [1, 1], strides = [1, 1]} : vector<3x1xf32> to vector<1x1xf32>
      %94 = vector.extract %93[0, 0] : f32 from vector<1x1xf32>
      %c1 = arith.constant 1 : index
      %c0_46 = arith.constant 0 : index
      %c0_47 = arith.constant 0 : index
      %95 = vector.load %arg12[%c1, %c0_46, %c0_47] : memref<3x16x128xbf16, #tpu.memory_space<vmem>>, vector<1x16x128xbf16>
      %96 = vector.shape_cast %95 : vector<1x16x128xbf16> to vector<16x128xbf16>
      %97 = arith.extf %96 : vector<16x128xbf16> to vector<16x128xf32>
      %98 = vector.broadcast %94 : f32 to vector<16x128xf32>
      %99 = arith.mulf %98, %97 : vector<16x128xf32>
      %100 = arith.addf %92, %99 : vector<16x128xf32>
      %101 = vector.extract_strided_slice %85 {offsets = [2, 0], sizes = [1, 1], strides = [1, 1]} : vector<3x1xf32> to vector<1x1xf32>
      %102 = vector.extract %101[0, 0] : f32 from vector<1x1xf32>
      %c2 = arith.constant 2 : index
      %c0_48 = arith.constant 0 : index
      %c0_49 = arith.constant 0 : index
      %103 = vector.load %arg12[%c2, %c0_48, %c0_49] : memref<3x16x128xbf16, #tpu.memory_space<vmem>>, vector<1x16x128xbf16>
      %104 = vector.shape_cast %103 : vector<1x16x128xbf16> to vector<16x128xbf16>
      %105 = arith.extf %104 : vector<16x128xbf16> to vector<16x128xf32>
      %106 = vector.broadcast %102 : f32 to vector<16x128xf32>
      %107 = arith.mulf %106, %105 : vector<16x128xf32>
      %108 = arith.addf %100, %107 : vector<16x128xf32>
      %c0_50 = arith.constant 0 : index
      %c0_51 = arith.constant 0 : index
      %109 = vector.load %arg11[%c0_50, %c0_51] : memref<16x128xf32, #tpu.memory_space<vmem>>, vector<16x128xf32>
      tpu.vector_store %arg11[%c0_50, %c0_51], %108 {strides = array<i32>} : memref<16x128xf32, #tpu.memory_space<vmem>>, vector<16x128xf32>,
    } else {
    }
    return
  }
  func.func @transform_0(%arg0: i32) -> (i32, i32, i32) {
    %c0_i32 = arith.constant 0 : i32
    %c0_i32_0 = arith.constant 0 : i32
    %c0_i32_1 = arith.constant 0 : i32
    return %arg0, %c0_i32, %c0_i32_0 : i32, i32, i32
  }
  func.func @transform_1(%arg0: i32) -> (i32, i32) {
    %c0_i32 = arith.constant 0 : i32
    %c0_i32_0 = arith.constant 0 : i32
    %c0_i32_1 = arith.constant 0 : i32
    return %c0_i32, %c0_i32_0 : i32, i32
  }
  func.func @transform_2(%arg0: i32) -> (i32, i32, i32) {
    %c0_i32 = arith.constant 0 : i32
    %c0_i32_0 = arith.constant 0 : i32
    %c0_i32_1 = arith.constant 0 : i32
    return %arg0, %c0_i32, %c0_i32_0 : i32, i32, i32
  }
  func.func @transform_3(%arg0: i32) -> (i32, i32, i32) {
    %c0_i32 = arith.constant 0 : i32
    %c0_i32_0 = arith.constant 0 : i32
    %c0_i32_1 = arith.constant 0 : i32
    return %arg0, %c0_i32, %c0_i32_0 : i32, i32, i32
  }
  func.func @transform_4(%arg0: i32) -> (i32, i32, i32) {
    %c0_i32 = arith.constant 0 : i32
    %c0_i32_0 = arith.constant 0 : i32
    %c0_i32_1 = arith.constant 0 : i32
    return %arg0, %c0_i32, %c0_i32_0 : i32, i32, i32
  }
  func.func @transform_5(%arg0: i32) -> (i32, i32, i32) {
    %c0_i32 = arith.constant 0 : i32
    %c0_i32_0 = arith.constant 0 : i32
    %c0_i32_1 = arith.constant 0 : i32
    return %arg0, %c0_i32, %c0_i32_0 : i32, i32, i32
  }
  func.func @transform_6(%arg0: i32) -> i32 {
    %c0_i32 = arith.constant 0 : i32
    %c0_i32_0 = arith.constant 0 : i32
    return %c0_i32 : i32
  }
  func.func @transform_7(%arg0: i32) -> (i32, i32) {
    %c0_i32 = arith.constant 0 : i32
    %c0_i32_0 = arith.constant 0 : i32
    %c0_i32_1 = arith.constant 0 : i32
    return %c0_i32, %c0_i32_0 : i32, i32
  }
  func.func @transform_8(%arg0: i32) -> (i32, i32) {
    %c0_i32 = arith.constant 0 : i32
    %c0_i32_0 = arith.constant 0 : i32
    %c0_i32_1 = arith.constant 0 : i32
    return %c0_i32, %c0_i32_0 : i32, i32
  }
  func.func @transform_9(%arg0: i32) -> (i32, i32) {
    %c0_i32 = arith.constant 0 : i32
    %c0_i32_0 = arith.constant 0 : i32
    %c0_i32_1 = arith.constant 0 : i32
    return %c0_i32, %c0_i32_0 : i32, i32
  }
  func.func @transform_10(%arg0: i32) -> (i32, i32) {
    %c0_i32 = arith.constant 0 : i32
    %c0_i32_0 = arith.constant 0 : i32
    %c0_i32_1 = arith.constant 0 : i32
    return %c0_i32, %c0_i32_0 : i32, i32
  }
}

</mosaic_0001>

<llo_original>
// kernel: tpu_custom_call.1
$region0: #{tpu_custom_call.1}
  #allocation0 [shape = 'u32[]', space=smem, size = 0x4, offset = 0x4, fixed_abs, tag = 'smem constant byte address 0x4 - core index']
  #allocation1 [shape = 'u32[144,128]{1,0:T(1,128)}', space=vmem, size = 0x12000, scoped, tag = 'internal scratch']
  #allocation2 [shape = 'bf16[3,16,128]{2,1,0:T(16,128)(2,1)}', space=vmem, size = 0x3000, scoped, tag = 'scratch operand']
  #allocation3 [shape = 'f32[3,1,128]{2,1,0:T(1,128)}', space=vmem, size = 0x600, scoped, tag = 'scratch operand']
  %s0 = inlined_call_operand.hbm [shape: bf16[3,16,16], index: 0, kind: input, shape index: {}]
  %s1 = inlined_call_operand.hbm [shape: bf16[16,128], index: 1, kind: input, shape index: {}]
  %s2 = inlined_call_operand.hbm [shape: bf16[3,128,128], index: 2, kind: input, shape index: {}]
  %s3 = inlined_call_operand.hbm [shape: bf16[3,128,128], index: 3, kind: input, shape index: {}]
  %s4 = inlined_call_operand.hbm [shape: bf16[3,384,128], index: 4, kind: input, shape index: {}]
  %s5 = inlined_call_operand.vmem [shape: f32[3,1,128], index: 5, kind: input, shape index: {}]
  %s6 = inlined_call_operand.vmem [shape: f32[3], index: 6, kind: input, shape index: {}]
  %s7 = inlined_call_operand.hbm [shape: f32[128,128], index: 7, kind: input, shape index: {}]
  %s8 = inlined_call_operand.vmem [shape: f32[1,128], index: 8, kind: input, shape index: {}]
  %s9 = inlined_call_operand.vmem [shape: f32[1,128], index: 9, kind: input, shape index: {}]
  %s10 = inlined_call_operand.hbm [shape: f32[16,128], index: 10, kind: output, shape index: {}]
  %s11 = sld [smem:[#allocation0]]
  $region105: #{tpu_custom_call.1} parent=0
    _
  %s13 = ssub.s32 1, %s11
  %s14 = scalar_select 0, %s13, %s11
  $region1: #{tpu_custom_call.1} parent=0
    #allocation4 [shape = 'u8[8192]{0}', space=vmem, size = 0x2000, scoped, tag = 'input window, operand 0']
    #allocation5 [shape = 's32[2]{0}', space=sflag, size = 0x8, scoped, tag = 'scoped memory for tpu_custom_call.1']
    #allocation6 [shape = 's32[2]{0}', space=sflag, size = 0x8, scoped, tag = 'scoped memory for tpu_custom_call.1']
    #allocation7 [shape = 's32[2]{0}', space=sflag, size = 0x8, scoped, tag = 'scoped memory for tpu_custom_call.1']
    #allocation8 [shape = 'u8[4096]{0}', space=vmem, size = 0x1000, scoped, tag = 'input window, operand 1, single buffered']
    #allocation9 [shape = 's32[1]{0}', space=sflag, size = 0x4, scoped, tag = 'scoped memory for tpu_custom_call.1']
    #allocation10 [shape = 'u8[65536]{0}', space=vmem, size = 0x10000, scoped, tag = 'input window, operand 2']
    #allocation11 [shape = 'u8[65536]{0}', space=vmem, size = 0x10000, scoped, tag = 'input window, operand 3']
    #allocation12 [shape = 'u8[196608]{0}', space=vmem, size = 0x30000, scoped, tag = 'input window, operand 4']
    #allocation13 [shape = 'u8[512]{0}', space=smem, size = 0x200, scoped, tag = 'input window, operand 6, single buffered']
    #allocation14 [shape = 'u8[65536]{0}', space=vmem, size = 0x10000, scoped, tag = 'input window, operand 7, single buffered']
    #allocation15 [shape = 'u8[8192]{0}', space=vmem, size = 0x2000, scoped, tag = 'output window, operand 0, single buffered']
    %15 = vsyncpa [#allocation5], 0
    %s16 = scalar_lea.sflag [#allocation5], 1
    %17 = vsyncpa %s16, 0
    %18 = vsyncpa [#allocation9], 0
    %19 = vsyncpa [#allocation7], 0
    %20 = vsyncpa [#allocation6], 0
    loop: start=0, step=1, limit=5
    $region2: #{tpu_custom_call.1} parent=1 // loop_pre_header
      _
    $region3: #{tpu_custom_call.1} parent=1 // loop_header
      %s22 = sphi 0, %s26
      %p23 = scmp.ge.s32.totalorder %s22, 5
      %s32 = sphi 0, %s34
      %s35 = sphi 0, %s32
      %s36 = sphi 0, %s35
      %s52 = sphi 0, %s36
      %s56 = sphi 0, %s56
      %s58 = sphi 0, %s56
      %s59 = sphi 0, %s58
      %s73 = sphi 0, %s59
      %s79 = sphi 0, %s81
      %s82 = sphi 0, %s79
      %s83 = sphi 0, %s82
      %s99 = sphi 0, %s83
      %s105 = sphi 0, %s107
      %s108 = sphi 0, %s105
      %s109 = sphi 0, %s108
      %s125 = sphi 0, %s109
      %s131 = sphi 0, %s133
      %s134 = sphi 0, %s131
      %s135 = sphi 0, %s134
      %s151 = sphi 0, %s135
      %s157 = sphi 0, %s159
      %s160 = sphi 0, %s157
      %s161 = sphi 0, %s160
      %s177 = sphi 0, %s161
      %s181 = sphi 0, %s181
      %s183 = sphi 0, %s181
      %s184 = sphi 0, %s183
      %s198 = sphi 0, %s184
      %s202 = sphi 0, %s202
      %s204 = sphi 0, %s202
      %s205 = sphi 0, %s204
      %s219 = sphi 0, %s205
      %s223 = sphi 0, %s223
      %s225 = sphi 0, %s223
      %s226 = sphi 0, %s225
      %s240 = sphi 0, %s226
      %s244 = sphi 0, %s244
      %s246 = sphi 0, %s244
      %s247 = sphi 0, %s246
      %s261 = sphi 0, %s247
      %s265 = sphi 0, %s265
      %s267 = sphi 0, %s265
      %s268 = sphi 0, %s267
      %s282 = sphi 0, %s268
    $region4: #{tpu_custom_call.1} parent=1 // loop_header_branch
      %25 = sbr.rel (%p23) target = $region8
    $region5: #{tpu_custom_call.1} parent=1 // loop_body
      %s27 = ssub.s32 %s22, 1
      %s28 = ssub.s32 %s22, 2
      %s29 = sadd.s32 %s22, 1
      %s30 = ssub.s32 %s22, %s29
      %p31 = scmp.eq.s32.totalorder %s30, 0
      %s33 = sadd.s32 %s32, 1
      %s34 = scalar_select %p31, %s32, %s33
      %p37 = pneg %p31
      %p38 = scmp.eq.s32.totalorder %s22, 2
      %p39 = por %p37, %p38
      %p40 = scmp.ne.s32.totalorder %s32, %s35
      %p41 = scmp.eq.s32.totalorder %s22, 0
      %p42 = por %p40, %p41
      %p43 = scmp.ne.s32.totalorder %s32, %s35
      %p44 = scmp.eq.s32.totalorder %s27, 2
      %p45 = por %p43, %p44
      %p46 = scmp.ne.s32.totalorder %s35, %s36
      %p47 = scmp.eq.s32.totalorder %s27, 0
      %p48 = por %p46, %p47
      %p49 = scmp.ne.s32.totalorder %s35, %s36
      %p50 = scmp.eq.s32.totalorder %s28, 2
      %p51 = por %p49, %p50
      %p53 = scmp.ne.s32.totalorder %s36, %s52
      %p54 = scmp.eq.s32.totalorder %s28, 0
      %p55 = por %p53, %p54
      %s57 = sadd.s32 %s56, 1
      %p60 = scmp.eq.s32.totalorder %s22, 2
      %p61 = scmp.ne.s32.totalorder %s56, %s58
      %p62 = scmp.eq.s32.totalorder %s22, 0
      %p63 = por %p61, %p62
      %p64 = scmp.ne.s32.totalorder %s56, %s58
      %p65 = scmp.eq.s32.totalorder %s27, 2
      %p66 = por %p64, %p65
      %p67 = scmp.ne.s32.totalorder %s58, %s59
      %p68 = scmp.eq.s32.totalorder %s27, 0
      %p69 = por %p67, %p68
      %p70 = scmp.ne.s32.totalorder %s58, %s59
      %p71 = scmp.eq.s32.totalorder %s28, 2
      %p72 = por %p70, %p71
      %p74 = scmp.ne.s32.totalorder %s59, %s73
      %p75 = scmp.eq.s32.totalorder %s28, 0
      %p76 = por %p74, %p75
      %s77 = ssub.s32 %s22, %s29
      %p78 = scmp.eq.s32.totalorder %s77, 0
      %s80 = sadd.s32 %s79, 1
      %s81 = scalar_select %p78, %s79, %s80
      %p84 = pneg %p78
      %p85 = scmp.eq.s32.totalorder %s22, 2
      %p86 = por %p84, %p85
      %p87 = scmp.ne.s32.totalorder %s79, %s82
      %p88 = scmp.eq.s32.totalorder %s22, 0
      %p89 = por %p87, %p88
      %p90 = scmp.ne.s32.totalorder %s79, %s82
      %p91 = scmp.eq.s32.totalorder %s27, 2
      %p92 = por %p90, %p91
      %p93 = scmp.ne.s32.totalorder %s82, %s83
      %p94 = scmp.eq.s32.totalorder %s27, 0
      %p95 = por %p93, %p94
      %p96 = scmp.ne.s32.totalorder %s82, %s83
      %p97 = scmp.eq.s32.totalorder %s28, 2
      %p98 = por %p96, %p97
      %p100 = scmp.ne.s32.totalorder %s83, %s99
      %p101 = scmp.eq.s32.totalorder %s28, 0
      %p102 = por %p100, %p101
      %s103 = ssub.s32 %s22, %s29
      %p104 = scmp.eq.s32.totalorder %s103, 0
      %s106 = sadd.s32 %s105, 1
      %s107 = scalar_select %p104, %s105, %s106
      %p110 = pneg %p104
      %p111 = scmp.eq.s32.totalorder %s22, 2
      %p112 = por %p110, %p111
      %p113 = scmp.ne.s32.totalorder %s105, %s108
      %p114 = scmp.eq.s32.totalorder %s22, 0
      %p115 = por %p113, %p114
      %p116 = scmp.ne.s32.totalorder %s105, %s108
      %p117 = scmp.eq.s32.totalorder %s27, 2
      %p118 = por %p116, %p117
      %p119 = scmp.ne.s32.totalorder %s108, %s109
      %p120 = scmp.eq.s32.totalorder %s27, 0
      %p121 = por %p119, %p120
      %p122 = scmp.ne.s32.totalorder %s108, %s109
      %p123 = scmp.eq.s32.totalorder %s28, 2
      %p124 = por %p122, %p123
      %p126 = scmp.ne.s32.totalorder %s109, %s125
      %p127 = scmp.eq.s32.totalorder %s28, 0
      %p128 = por %p126, %p127
      %s129 = ssub.s32 %s22, %s29
      %p130 = scmp.eq.s32.totalorder %s129, 0
      %s132 = sadd.s32 %s131, 1
      %s133 = scalar_select %p130, %s131, %s132
      %p136 = pneg %p130
      %p137 = scmp.eq.s32.totalorder %s22, 2
      %p138 = por %p136, %p137
      %p139 = scmp.ne.s32.totalorder %s131, %s134
      %p140 = scmp.eq.s32.totalorder %s22, 0
      %p141 = por %p139, %p140
      %p142 = scmp.ne.s32.totalorder %s131, %s134
      %p143 = scmp.eq.s32.totalorder %s27, 2
      %p144 = por %p142, %p143
      %p145 = scmp.ne.s32.totalorder %s134, %s135
      %p146 = scmp.eq.s32.totalorder %s27, 0
      %p147 = por %p145, %p146
      %p148 = scmp.ne.s32.totalorder %s134, %s135
      %p149 = scmp.eq.s32.totalorder %s28, 2
      %p150 = por %p148, %p149
      %p152 = scmp.ne.s32.totalorder %s135, %s151
      %p153 = scmp.eq.s32.totalorder %s28, 0
      %p154 = por %p152, %p153
      %s155 = ssub.s32 %s22, %s29
      %p156 = scmp.eq.s32.totalorder %s155, 0
      %s158 = sadd.s32 %s157, 1
      %s159 = scalar_select %p156, %s157, %s158
      %p162 = pneg %p156
      %p163 = scmp.eq.s32.totalorder %s22, 2
      %p164 = por %p162, %p163
      %p165 = scmp.ne.s32.totalorder %s157, %s160
      %p166 = scmp.eq.s32.totalorder %s22, 0
      %p167 = por %p165, %p166
      %p168 = scmp.ne.s32.totalorder %s157, %s160
      %p169 = scmp.eq.s32.totalorder %s27, 2
      %p170 = por %p168, %p169
      %p171 = scmp.ne.s32.totalorder %s160, %s161
      %p172 = scmp.eq.s32.totalorder %s27, 0
      %p173 = por %p171, %p172
      %p174 = scmp.ne.s32.totalorder %s160, %s161
      %p175 = scmp.eq.s32.totalorder %s28, 2
      %p176 = por %p174, %p175
      %p178 = scmp.ne.s32.totalorder %s161, %s177
      %p179 = scmp.eq.s32.totalorder %s28, 0
      %p180 = por %p178, %p179
      %s182 = sadd.s32 %s181, 1
      %p185 = scmp.eq.s32.totalorder %s22, 2
      %p186 = scmp.ne.s32.totalorder %s181, %s183
      %p187 = scmp.eq.s32.totalorder %s22, 0
      %p188 = por %p186, %p187
      %p189 = scmp.ne.s32.totalorder %s181, %s183
      %p190 = scmp.eq.s32.totalorder %s27, 2
      %p191 = por %p189, %p190
      %p192 = scmp.ne.s32.totalorder %s183, %s184
      %p193 = scmp.eq.s32.totalorder %s27, 0
      %p194 = por %p192, %p193
      %p195 = scmp.ne.s32.totalorder %s183, %s184
      %p196 = scmp.eq.s32.totalorder %s28, 2
      %p197 = por %p195, %p196
      %p199 = scmp.ne.s32.totalorder %s184, %s198
      %p200 = scmp.eq.s32.totalorder %s28, 0
      %p201 = por %p199, %p200
      %s203 = sadd.s32 %s202, 1
      %p206 = scmp.eq.s32.totalorder %s22, 2
      %p207 = scmp.ne.s32.totalorder %s202, %s204
      %p208 = scmp.eq.s32.totalorder %s22, 0
      %p209 = por %p207, %p208
      %p210 = scmp.ne.s32.totalorder %s202, %s204
      %p211 = scmp.eq.s32.totalorder %s27, 2
      %p212 = por %p210, %p211
      %p213 = scmp.ne.s32.totalorder %s204, %s205
      %p214 = scmp.eq.s32.totalorder %s27, 0
      %p215 = por %p213, %p214
      %p216 = scmp.ne.s32.totalorder %s204, %s205
      %p217 = scmp.eq.s32.totalorder %s28, 2
      %p218 = por %p216, %p217
      %p220 = scmp.ne.s32.totalorder %s205, %s219
      %p221 = scmp.eq.s32.totalorder %s28, 0
      %p222 = por %p220, %p221
      %s224 = sadd.s32 %s223, 1
      %p227 = scmp.eq.s32.totalorder %s22, 2
      %p228 = scmp.ne.s32.totalorder %s223, %s225
      %p229 = scmp.eq.s32.totalorder %s22, 0
      %p230 = por %p228, %p229
      %p231 = scmp.ne.s32.totalorder %s223, %s225
      %p232 = scmp.eq.s32.totalorder %s27, 2
      %p233 = por %p231, %p232
      %p234 = scmp.ne.s32.totalorder %s225, %s226
      %p235 = scmp.eq.s32.totalorder %s27, 0
      %p236 = por %p234, %p235
      %p237 = scmp.ne.s32.totalorder %s225, %s226
      %p238 = scmp.eq.s32.totalorder %s28, 2
      %p239 = por %p237, %p238
      %p241 = scmp.ne.s32.totalorder %s226, %s240
      %p242 = scmp.eq.s32.totalorder %s28, 0
      %p243 = por %p241, %p242
      %s245 = sadd.s32 %s244, 1
      %p248 = scmp.eq.s32.totalorder %s22, 2
      %p249 = scmp.ne.s32.totalorder %s244, %s246
      %p250 = scmp.eq.s32.totalorder %s22, 0
      %p251 = por %p249, %p250
      %p252 = scmp.ne.s32.totalorder %s244, %s246
      %p253 = scmp.eq.s32.totalorder %s27, 2
      %p254 = por %p252, %p253
      %p255 = scmp.ne.s32.totalorder %s246, %s247
      %p256 = scmp.eq.s32.totalorder %s27, 0
      %p257 = por %p255, %p256
      %p258 = scmp.ne.s32.totalorder %s246, %s247
      %p259 = scmp.eq.s32.totalorder %s28, 2
      %p260 = por %p258, %p259
      %p262 = scmp.ne.s32.totalorder %s247, %s261
      %p263 = scmp.eq.s32.totalorder %s28, 0
      %p264 = por %p262, %p263
      %s266 = sadd.s32 %s265, 1
      %p269 = scmp.eq.s32.totalorder %s22, 2
      %p270 = scmp.ne.s32.totalorder %s265, %s267
      %p271 = scmp.eq.s32.totalorder %s22, 0
      %p272 = por %p270, %p271
      %p273 = scmp.ne.s32.totalorder %s265, %s267
      %p274 = scmp.eq.s32.totalorder %s27, 2
      %p275 = por %p273, %p274
      %p276 = scmp.ne.s32.totalorder %s267, %s268
      %p277 = scmp.eq.s32.totalorder %s27, 0
      %p278 = por %p276, %p277
      %p279 = scmp.ne.s32.totalorder %s267, %s268
      %p280 = scmp.eq.s32.totalorder %s28, 2
      %p281 = por %p279, %p280
      %p283 = scmp.ne.s32.totalorder %s268, %s282
      %p284 = scmp.eq.s32.totalorder %s28, 0
      %p285 = por %p283, %p284
      %p286 = scmp.le.s32.totalorder 1, %s22
      %p287 = scmp.lt.s32.totalorder %s22, 4
      %p288 = pnand %p286, %p287
      %p289 = pneg %p288
      // Predicated region
      $region9: #{tpu_custom_call.1} parent=5 // pred_check
        _
      $region10: #{tpu_custom_call.1} parent=5 // pred_check_branch
        %291 = sbr.rel (%p288) target = $region12
      $region11: #{tpu_custom_call.1} parent=5 // pred_region
        %s292 = ssub.s32 %s22, 1
        // Predicated region
        $region13: #{tpu_custom_call.1} parent=11 // pred_check
          %p293 = pneg %p69
        $region14: #{tpu_custom_call.1} parent=11 // pred_check_branch
          %295 = sbr.rel (%p293) target = $region16
        $region15: #{tpu_custom_call.1} parent=11 // pred_region
          %s297 = ssub.s32 128, 128
          %298 = vsyncadd [#allocation9], %s297
          %s299 = sshll.u32 [#allocation8], 4
          %s300 = int_to_ptr.vmem [resolvable:$true] %s299
          %305 = dma.hbm_to_vmem [thread:$0]  %s1, 128, %s300, [#allocation9], 64, 64, 4
        $region16: #{tpu_custom_call.1} parent=11 // pred_fallthru
          _
        // Predicated region
        $region17: #{tpu_custom_call.1} parent=11 // pred_check
          %p306 = pneg %p194
        $region18: #{tpu_custom_call.1} parent=11 // pred_check_branch
          %308 = sbr.rel (%p306) target = $region20
        $region19: #{tpu_custom_call.1} parent=11 // pred_region
          %s310 = ssub.s32 16, 16
          %311 = vsyncadd [#allocation7], %s310
          %s313 = sshll.u32 %s6, 4
          %s314 = int_to_ptr.vmem [resolvable:$true] %s313
          %316 = dma.vmem_to_smem %s314, 16, [#allocation13], [#allocation7]
        $region20: #{tpu_custom_call.1} parent=11 // pred_fallthru
          _
        // Predicated region
        $region21: #{tpu_custom_call.1} parent=11 // pred_check
          %p317 = pneg %p215
        $region22: #{tpu_custom_call.1} parent=11 // pred_check_branch
          %319 = sbr.rel (%p317) target = $region24
        $region23: #{tpu_custom_call.1} parent=11 // pred_region
          %s321 = ssub.s32 2048, 2048
          %322 = vsyncadd [#allocation9], %s321
          %s323 = sshll.u32 [#allocation14], 4
          %s324 = int_to_ptr.vmem [resolvable:$true] %s323
          %329 = dma.hbm_to_vmem [thread:$0]  %s7, 2048, %s324, [#allocation9], 128, 128, 8
        $region24: #{tpu_custom_call.1} parent=11 // pred_fallthru
          _
        // Predicated region
        $region25: #{tpu_custom_call.1} parent=11 // pred_check
          %p330 = pneg %p236
        $region26: #{tpu_custom_call.1} parent=11 // pred_check_branch
          %332 = sbr.rel (%p330) target = $region28
        $region27: #{tpu_custom_call.1} parent=11 // pred_region
          _
        $region28: #{tpu_custom_call.1} parent=11 // pred_fallthru
          _
        // Predicated region
        $region29: #{tpu_custom_call.1} parent=11 // pred_check
          %p333 = pneg %p257
        $region30: #{tpu_custom_call.1} parent=11 // pred_check_branch
          %335 = sbr.rel (%p333) target = $region32
        $region31: #{tpu_custom_call.1} parent=11 // pred_region
          _
        $region32: #{tpu_custom_call.1} parent=11 // pred_fallthru
          _
      $region12: #{tpu_custom_call.1} parent=5 // pred_fallthru
        _
      %p336 = scmp.lt.s32.totalorder %s22, 3
      // Predicated region
      $region33: #{tpu_custom_call.1} parent=5 // pred_check
        %p337 = pneg %p336
      $region34: #{tpu_custom_call.1} parent=5 // pred_check_branch
        %339 = sbr.rel (%p337) target = $region36
      $region35: #{tpu_custom_call.1} parent=5 // pred_region
        // Predicated region
        $region37: #{tpu_custom_call.1} parent=35 // pred_check
          %p340 = pneg %p42
        $region38: #{tpu_custom_call.1} parent=35 // pred_check_branch
          %342 = sbr.rel (%p340) target = $region40
        $region39: #{tpu_custom_call.1} parent=35 // pred_region
          %s343 = sand.u32 %s22, 1
          %s344 = scalar_lea.sflag [#allocation5], %s343
          %s345 = sand.u32 %s32, 1
          %s346 = smul.addr %s345, 8
          %s347 = scalar_lea.vmem [#allocation4], %s346
          %s349 = ssub.s32 128, 128
          %350 = vsyncadd %s344, %s349
          %s351 = smul.addr %s22, 2
          %s352 = smul.addr %s351, 64
          %s353 = scalar_lea.hbm %s0, %s352
          %s354 = sshll.u32 %s347, 4
          %s355 = int_to_ptr.vmem [resolvable:$true] %s354
          %360 = dma.hbm_to_vmem [thread:$0]  %s353, 128, %s355, %s344, 64, 64, 4
        $region40: #{tpu_custom_call.1} parent=35 // pred_fallthru
          _
        // Predicated region
        $region41: #{tpu_custom_call.1} parent=35 // pred_check
          %p361 = pneg %p89
        $region42: #{tpu_custom_call.1} parent=35 // pred_check_branch
          %363 = sbr.rel (%p361) target = $region44
        $region43: #{tpu_custom_call.1} parent=35 // pred_region
          %s364 = sand.u32 %s22, 1
          %s365 = scalar_lea.sflag [#allocation5], %s364
          %s366 = sand.u32 %s79, 1
          %s367 = smul.addr %s366, 64
          %s368 = scalar_lea.vmem [#allocation10], %s367
          %s370 = ssub.s32 1024, 1024
          %371 = vsyncadd %s365, %s370
          %s372 = smul.addr %s22, 16
          %s373 = smul.addr %s372, 64
          %s374 = scalar_lea.hbm %s2, %s373
          %s375 = sshll.u32 %s368, 4
          %s376 = int_to_ptr.vmem [resolvable:$true] %s375
          %381 = dma.hbm_to_vmem [thread:$0]  %s374, 1024, %s376, %s365, 64, 64, 4
        $region44: #{tpu_custom_call.1} parent=35 // pred_fallthru
          _
        // Predicated region
        $region45: #{tpu_custom_call.1} parent=35 // pred_check
          %p382 = pneg %p115
        $region46: #{tpu_custom_call.1} parent=35 // pred_check_branch
          %384 = sbr.rel (%p382) target = $region48
        $region47: #{tpu_custom_call.1} parent=35 // pred_region
          %s385 = sand.u32 %s22, 1
          %s386 = scalar_lea.sflag [#allocation5], %s385
          %s387 = sand.u32 %s105, 1
          %s388 = smul.addr %s387, 64
          %s389 = scalar_lea.vmem [#allocation11], %s388
          %s391 = ssub.s32 1024, 1024
          %392 = vsyncadd %s386, %s391
          %s393 = smul.addr %s22, 16
          %s394 = smul.addr %s393, 64
          %s395 = scalar_lea.hbm %s3, %s394
          %s396 = sshll.u32 %s389, 4
          %s397 = int_to_ptr.vmem [resolvable:$true] %s396
          %402 = dma.hbm_to_vmem [thread:$0]  %s395, 1024, %s397, %s386, 64, 64, 4
        $region48: #{tpu_custom_call.1} parent=35 // pred_fallthru
          _
        // Predicated region
        $region49: #{tpu_custom_call.1} parent=35 // pred_check
          %p403 = pneg %p141
        $region50: #{tpu_custom_call.1} parent=35 // pred_check_branch
          %405 = sbr.rel (%p403) target = $region52
        $region51: #{tpu_custom_call.1} parent=35 // pred_region
          %s406 = sand.u32 %s22, 1
          %s407 = scalar_lea.sflag [#allocation5], %s406
          %s408 = sand.u32 %s131, 1
          %s409 = smul.addr %s408, 192
          %s410 = scalar_lea.vmem [#allocation12], %s409
          %s412 = ssub.s32 3072, 3072
          %413 = vsyncadd %s407, %s412
          %s414 = smul.addr %s22, 48
          %s415 = smul.addr %s414, 64
          %s416 = scalar_lea.hbm %s4, %s415
          %s417 = sshll.u32 %s410, 4
          %s418 = int_to_ptr.vmem [resolvable:$true] %s417
          %423 = dma.hbm_to_vmem [thread:$0]  %s416, 3072, %s418, %s407, 64, 64, 4
        $region52: #{tpu_custom_call.1} parent=35 // pred_fallthru
          _
        // Predicated region
        $region53: #{tpu_custom_call.1} parent=35 // pred_check
          %p424 = pneg %p167
        $region54: #{tpu_custom_call.1} parent=35 // pred_check_branch
          %426 = sbr.rel (%p424) target = $region56
        $region55: #{tpu_custom_call.1} parent=35 // pred_region
          %p427 = scmp.lt.s32.totalorder %s22, 2
          %s428 = scalar_select %p427, %s22, 2
          %s429 = scalar_lea.vmem %s5, %s428
        $region56: #{tpu_custom_call.1} parent=35 // pred_fallthru
          _
      $region36: #{tpu_custom_call.1} parent=5 // pred_fallthru
        _
      %p430 = scmp.le.s32.totalorder 1, %s22
      %p431 = scmp.lt.s32.totalorder %s22, 4
      %p432 = pnand %p430, %p431
      %p433 = pneg %p432
      // Predicated region
      $region57: #{tpu_custom_call.1} parent=5 // pred_check
        _
      $region58: #{tpu_custom_call.1} parent=5 // pred_check_branch
        %435 = sbr.rel (%p432) target = $region60
      $region59: #{tpu_custom_call.1} parent=5 // pred_region
        %s436 = ssub.s32 %s22, 1
        %s437 = sand.u32 %s27, 1
        %s438 = scalar_lea.sflag [#allocation5], %s437
        %s439 = sand.u32 %s35, 1
        %s440 = smul.addr %s439, 8
        %s441 = scalar_lea.vmem [#allocation4], %s440
        // Predicated region
        $region61: #{tpu_custom_call.1} parent=59 // pred_check
          %p442 = pneg %p48
        $region62: #{tpu_custom_call.1} parent=59 // pred_check_branch
          %444 = sbr.rel (%p442) target = $region64
        $region63: #{tpu_custom_call.1} parent=59 // pred_region
          %445 = dma.done %s438, 128
        $region64: #{tpu_custom_call.1} parent=59 // pred_fallthru
          _
        // Predicated region
        $region65: #{tpu_custom_call.1} parent=59 // pred_check
          %p446 = pneg %p69
        $region66: #{tpu_custom_call.1} parent=59 // pred_check_branch
          %448 = sbr.rel (%p446) target = $region68
        $region67: #{tpu_custom_call.1} parent=59 // pred_region
          %449 = dma.done [#allocation9], 128
        $region68: #{tpu_custom_call.1} parent=59 // pred_fallthru
          _
        %s450 = sand.u32 %s27, 1
        %s451 = scalar_lea.sflag [#allocation5], %s450
        %s452 = sand.u32 %s82, 1
        %s453 = smul.addr %s452, 64
        %s454 = scalar_lea.vmem [#allocation10], %s453
        // Predicated region
        $region69: #{tpu_custom_call.1} parent=59 // pred_check
          %p455 = pneg %p95
        $region70: #{tpu_custom_call.1} parent=59 // pred_check_branch
          %457 = sbr.rel (%p455) target = $region72
        $region71: #{tpu_custom_call.1} parent=59 // pred_region
          %458 = dma.done %s451, 1024
        $region72: #{tpu_custom_call.1} parent=59 // pred_fallthru
          _
        %s459 = sand.u32 %s27, 1
        %s460 = scalar_lea.sflag [#allocation5], %s459
        %s461 = sand.u32 %s108, 1
        %s462 = smul.addr %s461, 64
        %s463 = scalar_lea.vmem [#allocation11], %s462
        // Predicated region
        $region73: #{tpu_custom_call.1} parent=59 // pred_check
          %p464 = pneg %p121
        $region74: #{tpu_custom_call.1} parent=59 // pred_check_branch
          %466 = sbr.rel (%p464) target = $region76
        $region75: #{tpu_custom_call.1} parent=59 // pred_region
          %467 = dma.done %s460, 1024
        $region76: #{tpu_custom_call.1} parent=59 // pred_fallthru
          _
        %s468 = sand.u32 %s27, 1
        %s469 = scalar_lea.sflag [#allocation5], %s468
        %s470 = sand.u32 %s134, 1
        %s471 = smul.addr %s470, 192
        %s472 = scalar_lea.vmem [#allocation12], %s471
        // Predicated region
        $region77: #{tpu_custom_call.1} parent=59 // pred_check
          %p473 = pneg %p147
        $region78: #{tpu_custom_call.1} parent=59 // pred_check_branch
          %475 = sbr.rel (%p473) target = $region80
        $region79: #{tpu_custom_call.1} parent=59 // pred_region
          %476 = dma.done %s469, 3072
        $region80: #{tpu_custom_call.1} parent=59 // pred_fallthru
          _
        // Predicated region
        $region81: #{tpu_custom_call.1} parent=59 // pred_check
          %p477 = pneg %p194
        $region82: #{tpu_custom_call.1} parent=59 // pred_check_branch
          %479 = sbr.rel (%p477) target = $region84
        $region83: #{tpu_custom_call.1} parent=59 // pred_region
          %480 = dma.done [#allocation7], 16
        $region84: #{tpu_custom_call.1} parent=59 // pred_fallthru
          _
        // Predicated region
        $region85: #{tpu_custom_call.1} parent=59 // pred_check
          %p481 = pneg %p215
        $region86: #{tpu_custom_call.1} parent=59 // pred_check_branch
          %483 = sbr.rel (%p481) target = $region88
        $region87: #{tpu_custom_call.1} parent=59 // pred_region
          %484 = dma.done [#allocation9], 2048
        $region88: #{tpu_custom_call.1} parent=59 // pred_fallthru
          _
        %485 = sfence
        %s486 = sand.u32 %s27, 1
        %s487 = scalar_lea.sflag [#allocation5], %s486
        %s488 = sand.u32 %s35, 1
        %s489 = smul.addr %s488, 8
        %s490 = scalar_lea.vmem [#allocation4], %s489
        %p491 = pneg %p48
        %p492 = pneg %p45
        %p493 = pneg %p69
        %p494 = pneg %p66
        %s495 = sand.u32 %s27, 1
        %s496 = scalar_lea.sflag [#allocation5], %s495
        %s497 = sand.u32 %s82, 1
        %s498 = smul.addr %s497, 64
        %s499 = scalar_lea.vmem [#allocation10], %s498
        %p500 = pneg %p95
        %p501 = pneg %p92
        %s502 = sand.u32 %s27, 1
        %s503 = scalar_lea.sflag [#allocation5], %s502
        %s504 = sand.u32 %s108, 1
        %s505 = smul.addr %s504, 64
        %s506 = scalar_lea.vmem [#allocation11], %s505
        %p507 = pneg %p121
        %p508 = pneg %p118
        %s509 = sand.u32 %s27, 1
        %s510 = scalar_lea.sflag [#allocation5], %s509
        %s511 = sand.u32 %s134, 1
        %s512 = smul.addr %s511, 192
        %s513 = scalar_lea.vmem [#allocation12], %s512
        %p514 = pneg %p147
        %p515 = pneg %p144
        %p516 = scmp.lt.s32.totalorder %s27, 2
        %s517 = scalar_select %p516, %s27, 2
        %s518 = scalar_lea.vmem %s5, %s517
        %p519 = pneg %p173
        %p520 = pneg %p170
        %p521 = pneg %p194
        %p522 = pneg %p191
        %p523 = pneg %p215
        %p524 = pneg %p212
        %p525 = pneg %p236
        %p526 = pneg %p233
        %p527 = pneg %p257
        %p528 = pneg %p254
        %p529 = pneg %p278
        %p530 = pneg %p275
        %p531 = scmp.lt.s32.totalorder %s27, 2
        %s532 = scalar_select %p531, %s27, 2
        %s533 = scalar_lea.vmem %s5, %s532
        %v535 = vld [vmem:[%s441] sm:$0xf]
        %v536 = vld [vmem:[%s441 + $0x4] sm:$0xf]
        %v537 = vld [vmem:[#allocation8] sm:$0xf]
        %v538 = vld [vmem:[#allocation8 + $0x4] sm:$0xf]
        %v541 = vunpack.c.l.b16 %v535
        %v542 = vunpack.c.l.b16 %v536
        %v543 = vpack.c.b16 %v542, %v541
        %v546 = vunpack.c.l.b16 %v537
        %v547 = vunpack.c.l.b16 %v538
        %v548 = vpack.c.b16 %v547, %v546
        %vm550 = vcmask 130048
        %v552 = vsel %vm550, %v543, 0
        %554 = vmatprep.subr.bf16.mxu0 0
        %555 = vmatpush1.bf16.msra.mxu0 %v548
        %556 = vmatprep.subr.bf16.mxu0 0
        %557 = vmatpush1.bf16.msra.mxu0 0
        %558 = vmatprep.subr.bf16.mxu0 0
        %559 = vmatpush1.bf16.msra.mxu0 0
        %560 = vmatprep.subr.bf16.mxu0 0
        %561 = vmatpush1.bf16.msra.mxu0 0
        %562 = vmatprep.subr.bf16.mxu0 0
        %563 = vmatpush1.bf16.msra.mxu0 0
        %564 = vmatprep.subr.bf16.mxu0 0
        %565 = vmatpush1.bf16.msra.mxu0 0
        %566 = vmatprep.subr.bf16.mxu0 0
        %567 = vmatpush1.bf16.msra.mxu0 0
        %568 = vmatprep.subr.bf16.mxu0 0
        %569 = vmatpush1.bf16.msra.mxu0 0
        %570 = vmatprep.subr.bf16.mxu0 0
        %571 = vmatpush1.bf16.msra.mxu0 0
        %572 = vmatprep.subr.bf16.mxu0 0
        %573 = vmatpush1.bf16.msra.mxu0 0
        %574 = vmatprep.subr.bf16.mxu0 0
        %575 = vmatpush1.bf16.msra.mxu0 0
        %576 = vmatprep.subr.bf16.mxu0 0
        %577 = vmatpush1.bf16.msra.mxu0 0
        %578 = vmatprep.subr.bf16.mxu0 0
        %579 = vmatpush1.bf16.msra.mxu0 0
        %580 = vmatprep.subr.bf16.mxu0 0
        %581 = vmatpush1.bf16.msra.mxu0 0
        %582 = vmatprep.subr.bf16.mxu0 0
        %583 = vmatpush1.bf16.msra.mxu0 0
        %584 = vmatprep.subr.bf16.mxu0 0
        %585 = vmatpush1.bf16.msra.mxu0 0
        %586 = vmatprep.mubr.bf16.mxu0 0
        %587 = vmatmul.mubr.bf16.gmra.mrb[0].mxu0 %v552
        %v588 = vpop.f32.mrb[0].mxu0
        %v589 = vadd.f32 0.0, %v588
        %v590 = vpop.f32.mrb[0].mxu0
        %v591 = vpop.f32.mrb[0].mxu0
        %v592 = vadd.f32 0.0, %v591
        %v593 = vpop.f32.mrb[0].mxu0
        %594 = vdwg.mxu0
        %v595 = vpack.c.bf16 %v592, %v589
        %596 = vmatprep.subr.bf16.mxu0 0
        %597 = vmatpush1.bf16.msra.mxu0 %v595
        %598 = vmatprep.subr.bf16.mxu0 0
        %599 = vmatpush1.bf16.msra.mxu0 0
        %600 = vmatprep.subr.bf16.mxu0 0
        %601 = vmatpush1.bf16.msra.mxu0 0
        %602 = vmatprep.subr.bf16.mxu0 0
        %603 = vmatpush1.bf16.msra.mxu0 0
        %604 = vmatprep.subr.bf16.mxu0 0
        %605 = vmatpush1.bf16.msra.mxu0 0
        %606 = vmatprep.subr.bf16.mxu0 0
        %607 = vmatpush1.bf16.msra.mxu0 0
        %608 = vmatprep.subr.bf16.mxu0 0
        %609 = vmatpush1.bf16.msra.mxu0 0
        %610 = vmatprep.subr.bf16.mxu0 0
        %611 = vmatpush1.bf16.msra.mxu0 0
        %612 = vmatprep.subr.bf16.mxu0 0
        %613 = vmatpush1.bf16.msra.mxu0 0
        %614 = vmatprep.subr.bf16.mxu0 0
        %615 = vmatpush1.bf16.msra.mxu0 0
        %616 = vmatprep.subr.bf16.mxu0 0
        %617 = vmatpush1.bf16.msra.mxu0 0
        %618 = vmatprep.subr.bf16.mxu0 0
        %619 = vmatpush1.bf16.msra.mxu0 0
        %620 = vmatprep.subr.bf16.mxu0 0
        %621 = vmatpush1.bf16.msra.mxu0 0
        %622 = vmatprep.subr.bf16.mxu0 0
        %623 = vmatpush1.bf16.msra.mxu0 0
        %624 = vmatprep.subr.bf16.mxu0 0
        %625 = vmatpush1.bf16.msra.mxu0 0
        %626 = vmatprep.subr.bf16.mxu0 0
        %627 = vmatpush1.bf16.msra.mxu0 0
        %628 = vmatprep.mubr.bf16.mxu0 0
        %629 = vmatmul.mubr.bf16.gmra.mrb[0].mxu0 %v552
        %v630 = vpop.f32.mrb[0].mxu0
        %v631 = vadd.f32 0.0, %v630
        %v632 = vpop.f32.mrb[0].mxu0
        %v633 = vpop.f32.mrb[0].mxu0
        %v634 = vadd.f32 0.0, %v633
        %v635 = vpop.f32.mrb[0].mxu0
        %636 = vdwg.mxu0
        %v637 = vsub.f32 %v589, %v631
        %v638 = vsub.f32 %v592, %v634
        %v639 = vand.u32 2147483647, %v637
        %v640 = vand.u32 2147483647, %v638
        %v641 = vpack.c.bf16 %v640, %v639
        %v642 = vld [vmem:[%s454] sm:$0xf]
        %v643 = vld [vmem:[%s454 + $0x4] sm:$0xf]
        %v644 = vld [vmem:[%s454 + $0x8] sm:$0xf]
        %v645 = vld [vmem:[%s454 + $0xc] sm:$0xf]
        %v646 = vld [vmem:[%s454 + $0x10] sm:$0xf]
        %v647 = vld [vmem:[%s454 + $0x14] sm:$0xf]
        %v648 = vld [vmem:[%s454 + $0x18] sm:$0xf]
        %v649 = vld [vmem:[%s454 + $0x1c] sm:$0xf]
        %v650 = vld [vmem:[%s454 + $0x20] sm:$0xf]
        %v651 = vld [vmem:[%s454 + $0x24] sm:$0xf]
        %v652 = vld [vmem:[%s454 + $0x28] sm:$0xf]
        %v653 = vld [vmem:[%s454 + $0x2c] sm:$0xf]
        %v654 = vld [vmem:[%s454 + $0x30] sm:$0xf]
        %v655 = vld [vmem:[%s454 + $0x34] sm:$0xf]
        %v656 = vld [vmem:[%s454 + $0x38] sm:$0xf]
        %v657 = vld [vmem:[%s454 + $0x3c] sm:$0xf]
        %v658 = vpack.c.bf16 %v634, %v631
        %659 = vmatprep.subr.bf16.mxu0 0
        %660 = vmatpush1.bf16.msra.mxu0 %v658
        %661 = vmatprep.subr.bf16.mxu0 0
        %662 = vmatpush1.bf16.msra.mxu0 0
        %663 = vmatprep.subr.bf16.mxu0 0
        %664 = vmatpush1.bf16.msra.mxu0 0
        %665 = vmatprep.subr.bf16.mxu0 0
        %666 = vmatpush1.bf16.msra.mxu0 0
        %667 = vmatprep.subr.bf16.mxu0 0
        %668 = vmatpush1.bf16.msra.mxu0 0
        %669 = vmatprep.subr.bf16.mxu0 0
        %670 = vmatpush1.bf16.msra.mxu0 0
        %671 = vmatprep.subr.bf16.mxu0 0
        %672 = vmatpush1.bf16.msra.mxu0 0
        %673 = vmatprep.subr.bf16.mxu0 0
        %674 = vmatpush1.bf16.msra.mxu0 0
        %675 = vmatprep.subr.bf16.mxu0 0
        %676 = vmatpush1.bf16.msra.mxu0 0
        %677 = vmatprep.subr.bf16.mxu0 0
        %678 = vmatpush1.bf16.msra.mxu0 0
        %679 = vmatprep.subr.bf16.mxu0 0
        %680 = vmatpush1.bf16.msra.mxu0 0
        %681 = vmatprep.subr.bf16.mxu0 0
        %682 = vmatpush1.bf16.msra.mxu0 0
        %683 = vmatprep.subr.bf16.mxu0 0
        %684 = vmatpush1.bf16.msra.mxu0 0
        %685 = vmatprep.subr.bf16.mxu0 0
        %686 = vmatpush1.bf16.msra.mxu0 0
        %687 = vmatprep.subr.bf16.mxu0 0
        %688 = vmatpush1.bf16.msra.mxu0 0
        %689 = vmatprep.subr.bf16.mxu0 0
        %690 = vmatpush1.bf16.msra.mxu0 0
        %691 = vmatprep.mubr.bf16.mxu0 0
        %692 = vmatmul.mubr.bf16.gmra.mrb[0].mxu0 %v552
        %v693 = vpop.f32.mrb[0].mxu0
        %v694 = vadd.f32 0.0, %v693
        %v695 = vpop.f32.mrb[0].mxu0
        %v696 = vpop.f32.mrb[0].mxu0
        %v697 = vadd.f32 0.0, %v696
        %v698 = vpop.f32.mrb[0].mxu0
        %699 = vdwg.mxu0
        %v700 = vsub.f32 %v694, %v631
        %v701 = vsub.f32 %v697, %v634
        %v702 = vand.u32 2147483647, %v700
        %v703 = vand.u32 2147483647, %v701
        %v704 = vpack.c.bf16 %v703, %v702
        %v705 = vld [vmem:[%s463] sm:$0xf]
        %v706 = vld [vmem:[%s463 + $0x4] sm:$0xf]
        %v707 = vld [vmem:[%s463 + $0x8] sm:$0xf]
        %v708 = vld [vmem:[%s463 + $0xc] sm:$0xf]
        %v709 = vld [vmem:[%s463 + $0x10] sm:$0xf]
        %v710 = vld [vmem:[%s463 + $0x14] sm:$0xf]
        %v711 = vld [vmem:[%s463 + $0x18] sm:$0xf]
        %v712 = vld [vmem:[%s463 + $0x1c] sm:$0xf]
        %v713 = vld [vmem:[%s463 + $0x20] sm:$0xf]
        %v714 = vld [vmem:[%s463 + $0x24] sm:$0xf]
        %v715 = vld [vmem:[%s463 + $0x28] sm:$0xf]
        %v716 = vld [vmem:[%s463 + $0x2c] sm:$0xf]
        %v717 = vld [vmem:[%s463 + $0x30] sm:$0xf]
        %v718 = vld [vmem:[%s463 + $0x34] sm:$0xf]
        %v719 = vld [vmem:[%s463 + $0x38] sm:$0xf]
        %v720 = vld [vmem:[%s463 + $0x3c] sm:$0xf]
        %v737 = vunpack.c.l.b16 %v705
        %v738 = vunpack.c.l.b16 %v706
        %v739 = vunpack.c.l.b16 %v707
        %v740 = vunpack.c.l.b16 %v708
        %v741 = vunpack.c.l.b16 %v709
        %v742 = vunpack.c.l.b16 %v710
        %v743 = vunpack.c.l.b16 %v711
        %v744 = vunpack.c.l.b16 %v712
        %v745 = vunpack.c.l.b16 %v713
        %v746 = vunpack.c.l.b16 %v714
        %v747 = vunpack.c.l.b16 %v715
        %v748 = vunpack.c.l.b16 %v716
        %v749 = vunpack.c.l.b16 %v717
        %v750 = vunpack.c.l.b16 %v718
        %v751 = vunpack.c.l.b16 %v719
        %v752 = vunpack.c.l.b16 %v720
        %v753 = vpack.c.b16 %v738, %v737
        %v754 = vpack.c.b16 %v740, %v739
        %v755 = vpack.c.b16 %v742, %v741
        %v756 = vpack.c.b16 %v744, %v743
        %v757 = vpack.c.b16 %v746, %v745
        %v758 = vpack.c.b16 %v748, %v747
        %v759 = vpack.c.b16 %v750, %v749
        %v760 = vpack.c.b16 %v752, %v751
        %769 = vmatprep.subr.bf16.mxu0 0
        %770 = vmatpush1.bf16.msra.mxu0 %v753
        %771 = vmatprep.subr.bf16.mxu0 0
        %772 = vmatpush1.bf16.msra.mxu0 %v754
        %773 = vmatprep.subr.bf16.mxu0 0
        %774 = vmatpush1.bf16.msra.mxu0 %v755
        %775 = vmatprep.subr.bf16.mxu0 0
        %776 = vmatpush1.bf16.msra.mxu0 %v756
        %777 = vmatprep.subr.bf16.mxu0 0
        %778 = vmatpush1.bf16.msra.mxu0 %v757
        %779 = vmatprep.subr.bf16.mxu0 0
        %780 = vmatpush1.bf16.msra.mxu0 %v758
        %781 = vmatprep.subr.bf16.mxu0 0
        %782 = vmatpush1.bf16.msra.mxu0 %v759
        %783 = vmatprep.subr.bf16.mxu0 0
        %784 = vmatpush1.bf16.msra.mxu0 %v760
        %785 = vmatprep.subr.bf16.mxu0 0
        %786 = vmatpush1.bf16.msra.mxu0 0
        %787 = vmatprep.subr.bf16.mxu0 0
        %788 = vmatpush1.bf16.msra.mxu0 0
        %789 = vmatprep.subr.bf16.mxu0 0
        %790 = vmatpush1.bf16.msra.mxu0 0
        %791 = vmatprep.subr.bf16.mxu0 0
        %792 = vmatpush1.bf16.msra.mxu0 0
        %793 = vmatprep.subr.bf16.mxu0 0
        %794 = vmatpush1.bf16.msra.mxu0 0
        %795 = vmatprep.subr.bf16.mxu0 0
        %796 = vmatpush1.bf16.msra.mxu0 0
        %797 = vmatprep.subr.bf16.mxu0 0
        %798 = vmatpush1.bf16.msra.mxu0 0
        %799 = vmatprep.subr.bf16.mxu0 0
        %800 = vmatpush1.bf16.msra.mxu0 0
        %801 = vmatprep.mubr.bf16.mxu0 0
        %802 = vmatmul.mubr.bf16.gmra.mrb[0].mxu0 %v704
        %v803 = vpop.f32.mrb[0].mxu0
        %v804 = vadd.f32 0.0, %v803
        %v805 = vpop.f32.mrb[0].mxu0
        %v806 = vpop.f32.mrb[0].mxu0
        %v807 = vadd.f32 0.0, %v806
        %v808 = vpop.f32.mrb[0].mxu0
        %809 = vdwg.mxu0
        %v826 = vunpack.c.l.b16 %v642
        %v827 = vunpack.c.l.b16 %v643
        %v828 = vunpack.c.l.b16 %v644
        %v829 = vunpack.c.l.b16 %v645
        %v830 = vunpack.c.l.b16 %v646
        %v831 = vunpack.c.l.b16 %v647
        %v832 = vunpack.c.l.b16 %v648
        %v833 = vunpack.c.l.b16 %v649
        %v834 = vunpack.c.l.b16 %v650
        %v835 = vunpack.c.l.b16 %v651
        %v836 = vunpack.c.l.b16 %v652
        %v837 = vunpack.c.l.b16 %v653
        %v838 = vunpack.c.l.b16 %v654
        %v839 = vunpack.c.l.b16 %v655
        %v840 = vunpack.c.l.b16 %v656
        %v841 = vunpack.c.l.b16 %v657
        %v842 = vpack.c.b16 %v827, %v826
        %v843 = vpack.c.b16 %v829, %v828
        %v844 = vpack.c.b16 %v831, %v830
        %v845 = vpack.c.b16 %v833, %v832
        %v846 = vpack.c.b16 %v835, %v834
        %v847 = vpack.c.b16 %v837, %v836
        %v848 = vpack.c.b16 %v839, %v838
        %v849 = vpack.c.b16 %v841, %v840
        %858 = vmatprep.subr.bf16.mxu0 0
        %859 = vmatpush1.bf16.msra.mxu0 %v842
        %860 = vmatprep.subr.bf16.mxu0 0
        %861 = vmatpush1.bf16.msra.mxu0 %v843
        %862 = vmatprep.subr.bf16.mxu0 0
        %863 = vmatpush1.bf16.msra.mxu0 %v844
        %864 = vmatprep.subr.bf16.mxu0 0
        %865 = vmatpush1.bf16.msra.mxu0 %v845
        %866 = vmatprep.subr.bf16.mxu0 0
        %867 = vmatpush1.bf16.msra.mxu0 %v846
        %868 = vmatprep.subr.bf16.mxu0 0
        %869 = vmatpush1.bf16.msra.mxu0 %v847
        %870 = vmatprep.subr.bf16.mxu0 0
        %871 = vmatpush1.bf16.msra.mxu0 %v848
        %872 = vmatprep.subr.bf16.mxu0 0
        %873 = vmatpush1.bf16.msra.mxu0 %v849
        %874 = vmatprep.subr.bf16.mxu0 0
        %875 = vmatpush1.bf16.msra.mxu0 0
        %876 = vmatprep.subr.bf16.mxu0 0
        %877 = vmatpush1.bf16.msra.mxu0 0
        %878 = vmatprep.subr.bf16.mxu0 0
        %879 = vmatpush1.bf16.msra.mxu0 0
        %880 = vmatprep.subr.bf16.mxu0 0
        %881 = vmatpush1.bf16.msra.mxu0 0
        %882 = vmatprep.subr.bf16.mxu0 0
        %883 = vmatpush1.bf16.msra.mxu0 0
        %884 = vmatprep.subr.bf16.mxu0 0
        %885 = vmatpush1.bf16.msra.mxu0 0
        %886 = vmatprep.subr.bf16.mxu0 0
        %887 = vmatpush1.bf16.msra.mxu0 0
        %888 = vmatprep.subr.bf16.mxu0 0
        %889 = vmatpush1.bf16.msra.mxu0 0
        %890 = vmatprep.mubr.bf16.mxu0 0
        %891 = vmatmul.mubr.bf16.gmra.mrb[0].mxu0 %v641
        %v892 = vpop.f32.mrb[0].mxu0
        %v893 = vadd.f32 %v804, %v892
        %v894 = vpop.f32.mrb[0].mxu0
        %v895 = vpop.f32.mrb[0].mxu0
        %v896 = vadd.f32 %v807, %v895
        %v897 = vpop.f32.mrb[0].mxu0
        %898 = vdwg.mxu0
        %v899 = vpack.c.bf16 %v697, %v694
        %900 = vmatprep.subr.bf16.mxu0 0
        %901 = vmatpush1.bf16.msra.mxu0 %v899
        %902 = vmatprep.subr.bf16.mxu0 0
        %903 = vmatpush1.bf16.msra.mxu0 0
        %904 = vmatprep.subr.bf16.mxu0 0
        %905 = vmatpush1.bf16.msra.mxu0 0
        %906 = vmatprep.subr.bf16.mxu0 0
        %907 = vmatpush1.bf16.msra.mxu0 0
        %908 = vmatprep.subr.bf16.mxu0 0
        %909 = vmatpush1.bf16.msra.mxu0 0
        %910 = vmatprep.subr.bf16.mxu0 0
        %911 = vmatpush1.bf16.msra.mxu0 0
        %912 = vmatprep.subr.bf16.mxu0 0
        %913 = vmatpush1.bf16.msra.mxu0 0
        %914 = vmatprep.subr.bf16.mxu0 0
        %915 = vmatpush1.bf16.msra.mxu0 0
        %916 = vmatprep.subr.bf16.mxu0 0
        %917 = vmatpush1.bf16.msra.mxu0 0
        %918 = vmatprep.subr.bf16.mxu0 0
        %919 = vmatpush1.bf16.msra.mxu0 0
        %920 = vmatprep.subr.bf16.mxu0 0
        %921 = vmatpush1.bf16.msra.mxu0 0
        %922 = vmatprep.subr.bf16.mxu0 0
        %923 = vmatpush1.bf16.msra.mxu0 0
        %924 = vmatprep.subr.bf16.mxu0 0
        %925 = vmatpush1.bf16.msra.mxu0 0
        %926 = vmatprep.subr.bf16.mxu0 0
        %927 = vmatpush1.bf16.msra.mxu0 0
        %928 = vmatprep.subr.bf16.mxu0 0
        %929 = vmatpush1.bf16.msra.mxu0 0
        %930 = vmatprep.subr.bf16.mxu0 0
        %931 = vmatpush1.bf16.msra.mxu0 0
        %932 = vmatprep.mubr.bf16.mxu0 0
        %933 = vmatmul.mubr.bf16.gmra.mrb[0].mxu0 %v552
        %v934 = vpop.f32.mrb[0].mxu0
        %v935 = vadd.f32 0.0, %v934
        %v936 = vpop.f32.mrb[0].mxu0
        %v937 = vpop.f32.mrb[0].mxu0
        %v938 = vadd.f32 0.0, %v937
        %v939 = vpop.f32.mrb[0].mxu0
        %940 = vdwg.mxu0
        %v941 = vpack.c.bf16 %v938, %v935
        %v942 = vsub.f32 %v631, %v935
        %v943 = vsub.f32 %v634, %v938
        %v944 = vand.u32 2147483647, %v942
        %v945 = vand.u32 2147483647, %v943
        %v946 = vpack.c.bf16 %v945, %v944
        %v947 = vsub.f32 %v935, %v694
        %v948 = vsub.f32 %v938, %v697
        %v949 = vand.u32 2147483647, %v947
        %v950 = vand.u32 2147483647, %v948
        %v951 = vpack.c.bf16 %v950, %v949
        %v952 = vld [vmem:[%s472] sm:$0xf]
        %v953 = vld [vmem:[%s472 + $0x4] sm:$0xf]
        %v954 = vld [vmem:[%s472 + $0x8] sm:$0xf]
        %v955 = vld [vmem:[%s472 + $0xc] sm:$0xf]
        %v956 = vld [vmem:[%s472 + $0x10] sm:$0xf]
        %v957 = vld [vmem:[%s472 + $0x14] sm:$0xf]
        %v958 = vld [vmem:[%s472 + $0x18] sm:$0xf]
        %v959 = vld [vmem:[%s472 + $0x1c] sm:$0xf]
        %v960 = vld [vmem:[%s472 + $0x20] sm:$0xf]
        %v961 = vld [vmem:[%s472 + $0x24] sm:$0xf]
        %v962 = vld [vmem:[%s472 + $0x28] sm:$0xf]
        %v963 = vld [vmem:[%s472 + $0x2c] sm:$0xf]
        %v964 = vld [vmem:[%s472 + $0x30] sm:$0xf]
        %v965 = vld [vmem:[%s472 + $0x34] sm:$0xf]
        %v966 = vld [vmem:[%s472 + $0x38] sm:$0xf]
        %v967 = vld [vmem:[%s472 + $0x3c] sm:$0xf]
        %v968 = vld [vmem:[%s472 + $0x40] sm:$0xf]
        %v969 = vld [vmem:[%s472 + $0x44] sm:$0xf]
        %v970 = vld [vmem:[%s472 + $0x48] sm:$0xf]
        %v971 = vld [vmem:[%s472 + $0x4c] sm:$0xf]
        %v972 = vld [vmem:[%s472 + $0x50] sm:$0xf]
        %v973 = vld [vmem:[%s472 + $0x54] sm:$0xf]
        %v974 = vld [vmem:[%s472 + $0x58] sm:$0xf]
        %v975 = vld [vmem:[%s472 + $0x5c] sm:$0xf]
        %v976 = vld [vmem:[%s472 + $0x60] sm:$0xf]
        %v977 = vld [vmem:[%s472 + $0x64] sm:$0xf]
        %v978 = vld [vmem:[%s472 + $0x68] sm:$0xf]
        %v979 = vld [vmem:[%s472 + $0x6c] sm:$0xf]
        %v980 = vld [vmem:[%s472 + $0x70] sm:$0xf]
        %v981 = vld [vmem:[%s472 + $0x74] sm:$0xf]
        %v982 = vld [vmem:[%s472 + $0x78] sm:$0xf]
        %v983 = vld [vmem:[%s472 + $0x7c] sm:$0xf]
        %v984 = vld [vmem:[%s472 + $0x80] sm:$0xf]
        %v985 = vld [vmem:[%s472 + $0x84] sm:$0xf]
        %v986 = vld [vmem:[%s472 + $0x88] sm:$0xf]
        %v987 = vld [vmem:[%s472 + $0x8c] sm:$0xf]
        %v988 = vld [vmem:[%s472 + $0x90] sm:$0xf]
        %v989 = vld [vmem:[%s472 + $0x94] sm:$0xf]
        %v990 = vld [vmem:[%s472 + $0x98] sm:$0xf]
        %v991 = vld [vmem:[%s472 + $0x9c] sm:$0xf]
        %v992 = vld [vmem:[%s472 + $0xa0] sm:$0xf]
        %v993 = vld [vmem:[%s472 + $0xa4] sm:$0xf]
        %v994 = vld [vmem:[%s472 + $0xa8] sm:$0xf]
        %v995 = vld [vmem:[%s472 + $0xac] sm:$0xf]
        %v996 = vld [vmem:[%s472 + $0xb0] sm:$0xf]
        %v997 = vld [vmem:[%s472 + $0xb4] sm:$0xf]
        %v998 = vld [vmem:[%s472 + $0xb8] sm:$0xf]
        %v999 = vld [vmem:[%s472 + $0xbc] sm:$0xf]
        %v1048 = vunpack.c.l.b16 %v952
        %v1049 = vunpack.c.l.b16 %v953
        %v1050 = vunpack.c.l.b16 %v954
        %v1051 = vunpack.c.l.b16 %v955
        %v1052 = vunpack.c.l.b16 %v956
        %v1053 = vunpack.c.l.b16 %v957
        %v1054 = vunpack.c.l.b16 %v958
        %v1055 = vunpack.c.l.b16 %v959
        %v1056 = vunpack.c.l.b16 %v960
        %v1057 = vunpack.c.l.b16 %v961
        %v1058 = vunpack.c.l.b16 %v962
        %v1059 = vunpack.c.l.b16 %v963
        %v1060 = vunpack.c.l.b16 %v964
        %v1061 = vunpack.c.l.b16 %v965
        %v1062 = vunpack.c.l.b16 %v966
        %v1063 = vunpack.c.l.b16 %v967
        %v1064 = vunpack.c.l.b16 %v968
        %v1065 = vunpack.c.l.b16 %v969
        %v1066 = vunpack.c.l.b16 %v970
        %v1067 = vunpack.c.l.b16 %v971
        %v1068 = vunpack.c.l.b16 %v972
        %v1069 = vunpack.c.l.b16 %v973
        %v1070 = vunpack.c.l.b16 %v974
        %v1071 = vunpack.c.l.b16 %v975
        %v1072 = vunpack.c.l.b16 %v976
        %v1073 = vunpack.c.l.b16 %v977
        %v1074 = vunpack.c.l.b16 %v978
        %v1075 = vunpack.c.l.b16 %v979
        %v1076 = vunpack.c.l.b16 %v980
        %v1077 = vunpack.c.l.b16 %v981
        %v1078 = vunpack.c.l.b16 %v982
        %v1079 = vunpack.c.l.b16 %v983
        %v1080 = vunpack.c.l.b16 %v984
        %v1081 = vunpack.c.l.b16 %v985
        %v1082 = vunpack.c.l.b16 %v986
        %v1083 = vunpack.c.l.b16 %v987
        %v1084 = vunpack.c.l.b16 %v988
        %v1085 = vunpack.c.l.b16 %v989
        %v1086 = vunpack.c.l.b16 %v990
        %v1087 = vunpack.c.l.b16 %v991
        %v1088 = vunpack.c.l.b16 %v992
        %v1089 = vunpack.c.l.b16 %v993
        %v1090 = vunpack.c.l.b16 %v994
        %v1091 = vunpack.c.l.b16 %v995
        %v1092 = vunpack.c.l.b16 %v996
        %v1093 = vunpack.c.l.b16 %v997
        %v1094 = vunpack.c.l.b16 %v998
        %v1095 = vunpack.c.l.b16 %v999
        %v1096 = vpack.c.b16 %v1049, %v1048
        %v1097 = vpack.c.b16 %v1051, %v1050
        %v1098 = vpack.c.b16 %v1053, %v1052
        %v1099 = vpack.c.b16 %v1055, %v1054
        %v1100 = vpack.c.b16 %v1057, %v1056
        %v1101 = vpack.c.b16 %v1059, %v1058
        %v1102 = vpack.c.b16 %v1061, %v1060
        %v1103 = vpack.c.b16 %v1063, %v1062
        %v1104 = vpack.c.b16 %v1065, %v1064
        %v1105 = vpack.c.b16 %v1067, %v1066
        %v1106 = vpack.c.b16 %v1069, %v1068
        %v1107 = vpack.c.b16 %v1071, %v1070
        %v1108 = vpack.c.b16 %v1073, %v1072
        %v1109 = vpack.c.b16 %v1075, %v1074
        %v1110 = vpack.c.b16 %v1077, %v1076
        %v1111 = vpack.c.b16 %v1079, %v1078
        %v1112 = vpack.c.b16 %v1081, %v1080
        %v1113 = vpack.c.b16 %v1083, %v1082
        %v1114 = vpack.c.b16 %v1085, %v1084
        %v1115 = vpack.c.b16 %v1087, %v1086
        %v1116 = vpack.c.b16 %v1089, %v1088
        %v1117 = vpack.c.b16 %v1091, %v1090
        %v1118 = vpack.c.b16 %v1093, %v1092
        %v1119 = vpack.c.b16 %v1095, %v1094
        %1144 = vmatprep.subr.bf16.mxu0 0
        %1145 = vmatpush1.bf16.msra.mxu0 %v1096
        %1146 = vmatprep.subr.bf16.mxu0 0
        %1147 = vmatpush1.bf16.msra.mxu0 %v1097
        %1148 = vmatprep.subr.bf16.mxu0 0
        %1149 = vmatpush1.bf16.msra.mxu0 %v1098
        %1150 = vmatprep.subr.bf16.mxu0 0
        %1151 = vmatpush1.bf16.msra.mxu0 %v1099
        %1152 = vmatprep.subr.bf16.mxu0 0
        %1153 = vmatpush1.bf16.msra.mxu0 %v1100
        %1154 = vmatprep.subr.bf16.mxu0 0
        %1155 = vmatpush1.bf16.msra.mxu0 %v1101
        %1156 = vmatprep.subr.bf16.mxu0 0
        %1157 = vmatpush1.bf16.msra.mxu0 %v1102
        %1158 = vmatprep.subr.bf16.mxu0 0
        %1159 = vmatpush1.bf16.msra.mxu0 %v1103
        %1160 = vmatprep.subr.bf16.mxu0 0
        %1161 = vmatpush1.bf16.msra.mxu0 %v1104
        %1162 = vmatprep.subr.bf16.mxu0 0
        %1163 = vmatpush1.bf16.msra.mxu0 %v1105
        %1164 = vmatprep.subr.bf16.mxu0 0
        %1165 = vmatpush1.bf16.msra.mxu0 %v1106
        %1166 = vmatprep.subr.bf16.mxu0 0
        %1167 = vmatpush1.bf16.msra.mxu0 %v1107
        %1168 = vmatprep.subr.bf16.mxu0 0
        %1169 = vmatpush1.bf16.msra.mxu0 %v1108
        %1170 = vmatprep.subr.bf16.mxu0 0
        %1171 = vmatpush1.bf16.msra.mxu0 %v1109
        %1172 = vmatprep.subr.bf16.mxu0 0
        %1173 = vmatpush1.bf16.msra.mxu0 %v1110
        %1174 = vmatprep.subr.bf16.mxu0 0
        %1175 = vmatpush1.bf16.msra.mxu0 %v1111
        %1176 = vmatprep.mubr.bf16.mxu0 %v946
        %1177 = vmatmul.mubr.bf16.gmra.mrb[0].mxu0 %v941
        %v1178 = vpop.f32.mrb[0].mxu0
        %v1179 = vadd.f32 0.0, %v1178
        %v1180 = vpop.f32.mrb[0].mxu0
        %v1181 = vpop.f32.mrb[0].mxu0
        %v1182 = vadd.f32 0.0, %v1181
        %v1183 = vpop.f32.mrb[0].mxu0
        %1184 = vdwg.mxu0
        %1185 = vmatprep.subr.bf16.mxu0 0
        %1186 = vmatpush1.bf16.msra.mxu0 %v1112
        %1187 = vmatprep.subr.bf16.mxu0 0
        %1188 = vmatpush1.bf16.msra.mxu0 %v1113
        %1189 = vmatprep.subr.bf16.mxu0 0
        %1190 = vmatpush1.bf16.msra.mxu0 %v1114
        %1191 = vmatprep.subr.bf16.mxu0 0
        %1192 = vmatpush1.bf16.msra.mxu0 %v1115
        %1193 = vmatprep.subr.bf16.mxu0 0
        %1194 = vmatpush1.bf16.msra.mxu0 %v1116
        %1195 = vmatprep.subr.bf16.mxu0 0
        %1196 = vmatpush1.bf16.msra.mxu0 %v1117
        %1197 = vmatprep.subr.bf16.mxu0 0
        %1198 = vmatpush1.bf16.msra.mxu0 %v1118
        %1199 = vmatprep.subr.bf16.mxu0 0
        %1200 = vmatpush1.bf16.msra.mxu0 %v1119
        %1201 = vmatprep.subr.bf16.mxu0 0
        %1202 = vmatpush1.bf16.msra.mxu0 0
        %1203 = vmatprep.subr.bf16.mxu0 0
        %1204 = vmatpush1.bf16.msra.mxu0 0
        %1205 = vmatprep.subr.bf16.mxu0 0
        %1206 = vmatpush1.bf16.msra.mxu0 0
        %1207 = vmatprep.subr.bf16.mxu0 0
        %1208 = vmatpush1.bf16.msra.mxu0 0
        %1209 = vmatprep.subr.bf16.mxu0 0
        %1210 = vmatpush1.bf16.msra.mxu0 0
        %1211 = vmatprep.subr.bf16.mxu0 0
        %1212 = vmatpush1.bf16.msra.mxu0 0
        %1213 = vmatprep.subr.bf16.mxu0 0
        %1214 = vmatpush1.bf16.msra.mxu0 0
        %1215 = vmatprep.subr.bf16.mxu0 0
        %1216 = vmatpush1.bf16.msra.mxu0 0
        %1217 = vmatprep.mubr.bf16.mxu0 0
        %1218 = vmatmul.mubr.bf16.gmra.mrb[0].mxu0 %v951
        %v1219 = vpop.f32.mrb[0].mxu0
        %v1220 = vadd.f32 %v1179, %v1219
        %v1221 = vpop.f32.mrb[0].mxu0
        %v1222 = vpop.f32.mrb[0].mxu0
        %v1223 = vadd.f32 %v1182, %v1222
        %v1224 = vpop.f32.mrb[0].mxu0
        %1225 = vdwg.mxu0
        %v1226 = vadd.f32 %v893, %v1220
        %v1227 = vadd.f32 %v896, %v1223
        %v1228 = vld [vmem:[%s533] sm:$0x1]
        %v1230 = vlaneseq
        %v1231 = vshrl.u32 %v1230, 7
        %v1232 = vsub.s32 0, %v1231
        %v1233 = vrot.slane %v1228, %v1232
        %v1235 = vadd.f32 %v1226, %v1233
        %v1236 = vadd.f32 %v1227, %v1233
        %s1237 = sld [smem:[#allocation13 + %s27]]
        %vm1238 = vcmp.ge.f32.partialorder %v1235, 0.0
        %vm1239 = vcmp.ge.f32.partialorder %v1236, 0.0
        %v1240 = vstv %s1237
        %v1241 = vmul.f32 %v1240, %v1235
        %v1242 = vmul.f32 %v1240, %v1236
        %v1243 = vsel %vm1238, %v1235, %v1241
        %v1244 = vsel %vm1239, %v1236, %v1242
        %v1245 = vpack.c.bf16 %v1244, %v1243
        %s1246 = smul.addr %s27, 8
        %s1247 = scalar_lea.vmem [#allocation2], %s1246
        %1248 = vst [vmem:[%s1247] sm:$0xff] %v1245
        %v1249 = vld [vmem:[#allocation14] sm:$0xff]
        %v1250 = vld [vmem:[#allocation14 + $0x8] sm:$0xff]
        %v1251 = vld [vmem:[#allocation14 + $0x10] sm:$0xff]
        %v1252 = vld [vmem:[#allocation14 + $0x18] sm:$0xff]
        %v1253 = vld [vmem:[#allocation14 + $0x20] sm:$0xff]
        %v1254 = vld [vmem:[#allocation14 + $0x28] sm:$0xff]
        %v1255 = vld [vmem:[#allocation14 + $0x30] sm:$0xff]
        %v1256 = vld [vmem:[#allocation14 + $0x38] sm:$0xff]
        %v1257 = vld [vmem:[#allocation14 + $0x40] sm:$0xff]
        %v1258 = vld [vmem:[#allocation14 + $0x48] sm:$0xff]
        %v1259 = vld [vmem:[#allocation14 + $0x50] sm:$0xff]
        %v1260 = vld [vmem:[#allocation14 + $0x58] sm:$0xff]
        %v1261 = vld [vmem:[#allocation14 + $0x60] sm:$0xff]
        %v1262 = vld [vmem:[#allocation14 + $0x68] sm:$0xff]
        %v1263 = vld [vmem:[#allocation14 + $0x70] sm:$0xff]
        %v1264 = vld [vmem:[#allocation14 + $0x78] sm:$0xff]
        %v1265 = vld [vmem:[%s8] sm:$0x1]
        %v1267 = vlaneseq
        %v1268 = vshrl.u32 %v1267, 7
        %v1269 = vsub.s32 0, %v1268
        %v1270 = vrot.slane %v1265, %v1269
        %1272 = vmatprep.subr.mxu0 0.0
        %1273 = vmatpush1.msra.mxu0 %v1249
        %1274 = vmatprep.subr.mxu0 0.0
        %1275 = vmatpush1.msra.mxu0 %v1250
        %1276 = vmatprep.subr.mxu0 0.0
        %1277 = vmatpush1.msra.mxu0 %v1251
        %1278 = vmatprep.subr.mxu0 0.0
        %1279 = vmatpush1.msra.mxu0 %v1252
        %1280 = vmatprep.subr.mxu0 0.0
        %1281 = vmatpush1.msra.mxu0 %v1253
        %1282 = vmatprep.subr.mxu0 0.0
        %1283 = vmatpush1.msra.mxu0 %v1254
        %1284 = vmatprep.subr.mxu0 0.0
        %1285 = vmatpush1.msra.mxu0 %v1255
        %1286 = vmatprep.subr.mxu0 0.0
        %1287 = vmatpush1.msra.mxu0 %v1256
        %1288 = vmatprep.subr.mxu0 0.0
        %1289 = vmatpush1.msra.mxu0 %v1257
        %1290 = vmatprep.subr.mxu0 0.0
        %1291 = vmatpush1.msra.mxu0 %v1258
        %1292 = vmatprep.subr.mxu0 0.0
        %1293 = vmatpush1.msra.mxu0 %v1259
        %1294 = vmatprep.subr.mxu0 0.0
        %1295 = vmatpush1.msra.mxu0 %v1260
        %1296 = vmatprep.subr.mxu0 0.0
        %1297 = vmatpush1.msra.mxu0 %v1261
        %1298 = vmatprep.subr.mxu0 0.0
        %1299 = vmatpush1.msra.mxu0 %v1262
        %1300 = vmatprep.subr.mxu0 0.0
        %1301 = vmatpush1.msra.mxu0 %v1263
        %1302 = vmatprep.subr.mxu0 0.0
        %1303 = vmatpush1.msra.mxu0 %v1264
        %1304 = vmatprep.subr.mxu0 0.0
        %1305 = vmatpush1.msra.mxu0 0.0
        %1306 = vmatprep.subr.mxu0 0.0
        %1307 = vmatpush1.msra.mxu0 0.0
        %1308 = vmatprep.subr.mxu0 0.0
        %1309 = vmatpush1.msra.mxu0 0.0
        %1310 = vmatprep.subr.mxu0 0.0
        %1311 = vmatpush1.msra.mxu0 0.0
        %1312 = vmatprep.subr.mxu0 0.0
        %1313 = vmatpush1.msra.mxu0 0.0
        %1314 = vmatprep.subr.mxu0 0.0
        %1315 = vmatpush1.msra.mxu0 0.0
        %1316 = vmatprep.subr.mxu0 0.0
        %1317 = vmatpush1.msra.mxu0 0.0
        %1318 = vmatprep.subr.mxu0 0.0
        %1319 = vmatpush1.msra.mxu0 0.0
        %1320 = vmatprep.subr.mxu0 0.0
        %1321 = vmatpush1.msra.mxu0 0.0
        %1322 = vmatprep.subr.mxu0 0.0
        %1323 = vmatpush1.msra.mxu0 0.0
        %1324 = vmatprep.subr.mxu0 0.0
        %1325 = vmatpush1.msra.mxu0 0.0
        %1326 = vmatprep.subr.mxu0 0.0
        %1327 = vmatpush1.msra.mxu0 0.0
        %1328 = vmatprep.subr.mxu0 0.0
        %1329 = vmatpush1.msra.mxu0 0.0
        %1330 = vmatprep.subr.mxu0 0.0
        %1331 = vmatpush1.msra.mxu0 0.0
        %1332 = vmatprep.subr.mxu0 0.0
        %1333 = vmatpush1.msra.mxu0 0.0
        %1334 = vmatprep.subr.mxu0 0.0
        %1335 = vmatpush1.msra.mxu0 0.0
        %1336 = vmatprep.mubr.f32.mxu0 0.0
        %1337 = vmatmul.mubr.f32.gmra.mrb[0].mxu0 %v1243
        %v1338 = vpop.f32.mrb[0].mxu0
        %v1339 = vadd.f32 %v1270, %v1338
        %v1340 = vpop.f32.mrb[0].mxu0
        %1341 = vmatprep.mubr.f32.mxu0 0.0
        %1342 = vmatmul.mubr.f32.gmra.mrb[0].mxu0 %v1244
        %v1343 = vpop.f32.mrb[0].mxu0
        %v1344 = vadd.f32 %v1270, %v1343
        %v1345 = vpop.f32.mrb[0].mxu0
        %1346 = vdwg.mxu0
        %v1347 = vtanh.pop %v1339
        %v1348 = vtanh.pop %v1344
        %v1349 = vadd.f32 %v1347, %v1348
        %v1350 = vrot.slane %v1349, 4
        %v1351 = vadd.f32 %v1349, %v1350
        %v1352 = vrot.slane %v1351, 2
        %v1353 = vadd.f32 %v1351, %v1352
        %v1354 = vrot.slane %v1353, 1
        %v1355 = vadd.f32 %v1353, %v1354
        %v1356 = vrcp.pop 16.0
        %v1357 = vmul.f32 %v1355, %v1356
        %s1358 = scalar_lea.vmem [#allocation3], %s27
        %1359 = vst [vmem:[%s1358] sm:$0x1] %v1357
        %p1360 = scmp.eq.s32.totalorder %s27, 2
        // Predicated region
        $region89: #{tpu_custom_call.1} parent=59 // pred_check
          %p1361 = pneg %p1360
        $region90: #{tpu_custom_call.1} parent=59 // pred_check_branch
          %1363 = sbr.rel (%p1361) target = $region92
        $region91: #{tpu_custom_call.1} parent=59 // pred_region
          %v1364 = vld [vmem:[#allocation3] sm:$0x1]
          %v1365 = vld [vmem:[#allocation3 + $0x1] sm:$0x1]
          %v1366 = vld [vmem:[#allocation3 + $0x2] sm:$0x1]
          %v1367 = vld [vmem:[%s9] sm:$0x1]
          %v1369 = vlaneseq
          %v1370 = vshrl.u32 %v1369, 7
          %v1371 = vsub.s32 0, %v1370
          %v1372 = vrot.slane %v1367, %v1371
          %v1374 = vunpack.c.l.s4 1966171168
          %v1375 = vunpack.c.0.s8 %v1374
          %v1376 = vlaneseq
          %v1377 = vshrl.u32 %v1376, 7
          %v1378 = vsub.s32 %v1375, %v1377
          %v1379 = vrot.slane %v1372, %v1378
          %v1380 = vcombine.high %v1379, %v1379
          %v1382 = vunpack.c.l.s4 1966171168
          %v1383 = vunpack.c.0.s8 %v1382
          %v1384 = vlaneseq
          %v1385 = vshrl.u32 %v1384, 7
          %v1386 = vsub.s32 %v1383, %v1385
          %v1387 = vrot.slane %v1379, %v1386
          %v1389 = vunpack.c.l.s4 1966171168
          %v1390 = vunpack.c.0.s8 %v1389
          %v1391 = vlaneseq
          %v1392 = vshrl.u32 %v1391, 7
          %v1393 = vsub.s32 %v1390, %v1392
          %v1394 = vrot.slane %v1380, %v1393
          %v1395 = vcombine.high %v1387, %v1387
          %v1399 = vmul.f32 %v1364, %v1387
          %v1400 = vmul.f32 %v1365, %v1394
          %v1401 = vmul.f32 %v1366, %v1395
          %v1405 = vcombine.low %v1399, %v1400
          %v1407 = vunpack.c.l.s4 1966171168
          %v1408 = vunpack.c.0.s8 %v1407
          %v1409 = vlaneseq
          %v1410 = vshrl.u32 %v1409, 7
          %v1411 = vsub.s32 %v1408, %v1410
          %v1412 = vrot.slane %v1405, %v1411
          %v1414 = vunpack.c.l.s4 1966171168
          %v1415 = vunpack.c.0.s8 %v1414
          %v1416 = vlaneseq
          %v1417 = vshrl.u32 %v1416, 7
          %v1418 = vsub.s32 %v1415, %v1417
          %v1419 = vrot.slane %v1401, %v1418
          %v1420 = vcombine.low %v1412, %v1419
          %v1422 = vunpack.c.l.s4 1966171168
          %v1423 = vunpack.c.0.s8 %v1422
          %v1424 = vlaneseq
          %v1425 = vshrl.u32 %v1424, 7
          %v1426 = vsub.s32 %v1423, %v1425
          %v1427 = vrot.slane %v1420, %v1426
          %vm1429 = vcmask 1042432
          %v1430 = vsel %vm1429, %v1427, 0.0
          %1431 = vadd.xlane.f32.xlu0 %v1430
          %v1432 = vpop.xlane.xlu0 %1431
          %v1433 = vsel %vm1429, %v1432, -inf
          %v1434 = vrot.slane %v1433, 4
          %v1435 = vmax.f32 %v1433, %v1434
          %v1436 = vrot.slane %v1435, 2
          %v1437 = vmax.f32 %v1435, %v1436
          %v1438 = vrot.slane %v1437, 1
          %v1439 = vmax.f32 %v1437, %v1438
          %v1440 = vsub.f32 %v1432, %v1439
          %v1441 = vmul.f32 %v1440, 1.442695
          %v1442 = vpow.pop %v1441
          %v1443 = vsel %vm1429, %v1442, 0.0
          %v1444 = vrot.slane %v1443, 4
          %v1445 = vadd.f32 %v1443, %v1444
          %v1446 = vrot.slane %v1445, 2
          %v1447 = vadd.f32 %v1445, %v1446
          %v1448 = vrot.slane %v1447, 1
          %v1449 = vadd.f32 %v1447, %v1448
          %v1450 = vrcp.pop %v1449
          %v1451 = vmul.f32 %v1442, %v1450
          %s1452 = vtos %v1451
          %v1453 = vld [vmem:[#allocation2] sm:$0xff]
          %v1454 = vunpack.c.l.bf16 %v1453
          %v1455 = vunpack.c.h.bf16 %v1453
          %v1456 = vstv %s1452
          %v1457 = vmul.f32 %v1456, %v1454
          %v1458 = vmul.f32 %v1456, %v1455
          %v1459 = vrot.slane %v1451, 1
          %s1460 = vtos %v1459
          %s1461 = scalar_lea.vmem [#allocation2], 8
          %v1462 = vld [vmem:[%s1461] sm:$0xff]
          %v1463 = vunpack.c.l.bf16 %v1462
          %v1464 = vunpack.c.h.bf16 %v1462
          %v1465 = vstv %s1460
          %v1466 = vmul.f32 %v1465, %v1463
          %v1467 = vmul.f32 %v1465, %v1464
          %v1468 = vadd.f32 %v1457, %v1466
          %v1469 = vadd.f32 %v1458, %v1467
          %v1470 = vrot.slane %v1451, 2
          %s1471 = vtos %v1470
          %s1472 = scalar_lea.vmem [#allocation2], 16
          %v1473 = vld [vmem:[%s1472] sm:$0xff]
          %v1474 = vunpack.c.l.bf16 %v1473
          %v1475 = vunpack.c.h.bf16 %v1473
          %v1476 = vstv %s1471
          %v1477 = vmul.f32 %v1476, %v1474
          %v1478 = vmul.f32 %v1476, %v1475
          %v1479 = vadd.f32 %v1468, %v1477
          %v1480 = vadd.f32 %v1469, %v1478
          %1481 = vst [vmem:[#allocation15] sm:$0xff] %v1479
          %1482 = vst [vmem:[#allocation15 + $0x8] sm:$0xff] %v1480
        $region92: #{tpu_custom_call.1} parent=59 // pred_fallthru
          _
        // Predicated region
        $region93: #{tpu_custom_call.1} parent=59 // pred_check
          %p1483 = pneg %p275
        $region94: #{tpu_custom_call.1} parent=59 // pred_check_branch
          %1485 = sbr.rel (%p1483) target = $region96
        $region95: #{tpu_custom_call.1} parent=59 // pred_region
          %s1487 = ssub.s32 256, 256
          %1488 = vsyncadd [#allocation6], %s1487
          %s1489 = sshll.u32 [#allocation15], 4
          %s1490 = int_to_ptr.vmem [resolvable:$true] %s1489
          %1495 = dma.vmem_to_hbm [thread:$0]  %s1490, 256, %s10, [#allocation6], 128, 128, 8
        $region96: #{tpu_custom_call.1} parent=59 // pred_fallthru
          _
        // Predicated region
        $region97: #{tpu_custom_call.1} parent=59 // pred_check
          %p1496 = pneg %p275
        $region98: #{tpu_custom_call.1} parent=59 // pred_check_branch
          %1498 = sbr.rel (%p1496) target = $region100
        $region99: #{tpu_custom_call.1} parent=59 // pred_region
          %1499 = dma.done [#allocation6], 256
        $region100: #{tpu_custom_call.1} parent=59 // pred_fallthru
          _
      $region60: #{tpu_custom_call.1} parent=5 // pred_fallthru
        _
      %p1500 = scmp.le.s32.totalorder 2, %s22
      // Predicated region
      $region101: #{tpu_custom_call.1} parent=5 // pred_check
        %p1501 = pneg %p1500
      $region102: #{tpu_custom_call.1} parent=5 // pred_check_branch
        %1503 = sbr.rel (%p1501) target = $region104
      $region103: #{tpu_custom_call.1} parent=5 // pred_region
        %s1504 = ssub.s32 %s22, 2
      $region104: #{tpu_custom_call.1} parent=5 // pred_fallthru
        _
    $region6: #{tpu_custom_call.1} parent=1 // loop_footer
      %s26 = sadd.s32 1, %s22
    $region7: #{tpu_custom_call.1} parent=1 // loop_footer_branch
      %21 = sbr.rel target = $region3
    $region8: #{tpu_custom_call.1} parent=1 // loop_exit
      _
    %1505 = vsyncpa [#allocation5], 1
    %s1506 = scalar_lea.sflag [#allocation5], 1
    %1507 = vsyncpa %s1506, 1
    %1508 = vsyncpa [#allocation9], 1
    %1509 = vsyncpa [#allocation6], 1
    %s1510 = scalar_lea.sflag [#allocation6], 1
    %1511 = vsyncpa %s1510, 1
    %1512 = vsyncpa [#allocation7], 1
    %s1513 = scalar_lea.sflag [#allocation7], 1
    %1514 = vsyncpa %s1513, 1

</llo_original>
